<compile_context>
chip_gen: v5e
topology: v5e:2x2
jax: 0.10.0
libtpu: 0.0.40
codegen_flags: <defaults>
</compile_context>

<pallas_src>
import functools
import math

import jax
import jax.numpy as jnp
from jax.experimental import pallas as pl
from jax.experimental.pallas import tpu as pltpu


def _round_up(x, m):
    return ((x + m - 1) // m) * m


# ----------------------------------------------------------------------------
# Fused kernel: (patches @ W + b) followed by LayerNorm over groups of `wg`
# consecutive rows (the patch-grid width axis of the NCHW conv output).
# ----------------------------------------------------------------------------
def _patch_conv_ln_kernel(x_ref, w_ref, b_ref, g_ref, bb_ref, o_ref, *, wg, eps):
    # x_ref : (TM, Kp)   flattened patches (row order: b, hg, wg)
    # w_ref : (Kp, Np)   conv weight reshaped+transposed (resident)
    # b_ref : (1, Np)    conv bias (resident)
    # g_ref : (wg, Np)   LayerNorm gamma, broadcast along the channel (lane) axis
    # bb_ref: (wg, Np)   LayerNorm beta,  broadcast along the channel (lane) axis
    acc = jnp.dot(x_ref[...], w_ref[...], preferred_element_type=jnp.float32)
    acc = acc + b_ref[...]

    tm, n = acc.shape
    # Each LayerNorm group = `wg` consecutive rows (same (b, hg)) per column.
    x3 = acc.reshape(tm // wg, wg, n)
    mean = jnp.mean(x3, axis=1, keepdims=True)
    diff = x3 - mean
    var = jnp.mean(diff * diff, axis=1, keepdims=True)   # biased variance (torch LN)
    inv = jax.lax.rsqrt(var + eps)
    y = diff * inv * g_ref[...][None, :, :] + bb_ref[...][None, :, :]
    o_ref[...] = y.reshape(tm, n).astype(o_ref.dtype)


def _choose_tile_m(M, Kp, Np, Wg, tile_m, budget_bytes):
    """Largest row tile that (a) is a multiple of 8 and Wg, (b) fits the VMEM budget."""
    align = math.lcm(8, Wg)

    def est(t):
        # double-buffered x/out tiles + double-buffered residents + headroom
        return 4 * (2 * t * (Kp + Np) + 2 * (Kp * Np + Np + 2 * Wg * Np))

    tm = _round_up(min(tile_m, M), align)
    while tm > align and est(tm) > budget_bytes:
        tm = max(align, _round_up(tm // 2, align))
    return tm, est(tm)


def siglip_transformer_forward(pixel_values, params, cfg, *, tile_m=512):
    p = cfg["patch_size"]
    eps = cfg["layer_norm_eps"]
    B, C, H, W = pixel_values.shape
    Hg, Wg = H // p, W // p

    weight = params["conv_w"]
    bias = params["conv_b"]
    gamma = params["ln_gamma"]
    beta = params["ln_beta"]
    Cout = weight.shape[0]
    K = C * p * p
    M = B * Hg * Wg

    # LayerNorm(hidden_size) over the last dim of the NCHW conv output requires
    # hidden_size == W/p (same constraint PyTorch would enforce at runtime).
    assert gamma.shape[0] == Wg and beta.shape[0] == Wg, (
        "hidden_size must equal image_size // patch_size for post_layernorm to apply"
    )

    # --- flatten patches: [M, K], K ordered (C, ph, pw) to match OIHW conv weight ---
    x = pixel_values.reshape(B, C, Hg, p, Wg, p)
    x = x.transpose(0, 2, 4, 1, 3, 5).reshape(M, K).astype(jnp.float32)
    w = weight.reshape(Cout, K).T.astype(jnp.float32)        # [K, Cout]

    # --- lane-align K and Cout (zero padding is exact; sliced off after) ---
    Kp = _round_up(K, 128)
    Np = _round_up(Cout, 128)
    if Kp != K:
        x = jnp.pad(x, ((0, 0), (0, Kp - K)))
        w = jnp.pad(w, ((0, Kp - K), (0, 0)))
    if Np != Cout:
        w = jnp.pad(w, ((0, 0), (0, Np - Cout)))
    b2 = jnp.pad(bias.astype(jnp.float32), (0, Np - Cout)).reshape(1, Np)

    # gamma/beta indexed by wg (the normalized axis), broadcast along channels (lanes).
    g2 = jnp.broadcast_to(gamma.astype(jnp.float32).reshape(Wg, 1), (Wg, Np))
    bb2 = jnp.broadcast_to(beta.astype(jnp.float32).reshape(Wg, 1), (Wg, Np))

    # --- row tiling: TM multiple of 8 (sublanes) and of Wg (LN group size) ---
    TM, est_bytes = _choose_tile_m(M, Kp, Np, Wg, tile_m, budget_bytes=40 << 20)
    Mp = _round_up(M, TM)
    if Mp != M:
        # Mp - M is a multiple of TM's alignment (hence of Wg): pad rows form
        # complete LN groups and never mix with real rows; sliced off below.
        x = jnp.pad(x, ((0, Mp - M), (0, 0)))
    grid = (Mp // TM,)

    # Explicit VMEM budget with headroom, clamped for v7x's 64 MiB physical VMEM.
    vmem_limit = min(max(int(est_bytes * 1.25), 16 << 20), 48 << 20)

    kernel = functools.partial(_patch_conv_ln_kernel, wg=Wg, eps=eps)
    out = pl.pallas_call(
        kernel,
        out_shape=jax.ShapeDtypeStruct((Mp, Np), jnp.float32),
        grid=grid,
        in_specs=[
            pl.BlockSpec((TM, Kp), lambda i: (i, 0)),    # patch rows: tiled over M
            pl.BlockSpec((Kp, Np), lambda i: (0, 0)),    # weight: resident
            pl.BlockSpec((1, Np), lambda i: (0, 0)),     # bias: resident
            pl.BlockSpec((Wg, Np), lambda i: (0, 0)),    # gamma: resident
            pl.BlockSpec((Wg, Np), lambda i: (0, 0)),    # beta: resident
        ],
        out_specs=pl.BlockSpec((TM, Np), lambda i: (i, 0)),
        compiler_params=pltpu.CompilerParams(
            dimension_semantics=("parallel",),
            vmem_limit_bytes=vmem_limit,
        ),
    )(x, w, b2, g2, bb2)

    # Slice off padding and convert to the NCHW layout the reference module returns.
    out = out[:M, :Cout].reshape(B, Hg, Wg, Cout).transpose(0, 3, 1, 2)
    return out


# ----------------------------------------------------------------------------
# Reference (plain JAX) for a silent correctness check
# ----------------------------------------------------------------------------
def _reference_forward(pixel_values, params, cfg):
    p = cfg["patch_size"]
    conv_out = jax.lax.conv_general_dilated(
        pixel_values,
        params["conv_w"],
        window_strides=(p, p),
        padding="VALID",
        dimension_numbers=("NCHW", "OIHW", "NCHW"),
    ) + params["conv_b"].reshape(1, -1, 1, 1)
    mean = jnp.mean(conv_out, axis=-1, keepdims=True)
    var = jnp.mean((conv_out - mean) ** 2, axis=-1, keepdims=True)
    normed = (conv_out - mean) * jax.lax.rsqrt(var + cfg["layer_norm_eps"])
    return normed * params["ln_gamma"] + params["ln_beta"]


if __name__ == "__main__":
    # Small config consistent with the module:
    #   image_size=32, patch_size=2 -> patch grid 16x16, num_patches = 256 = conv
    #   out_channels (embed_dim); hidden_size = 16 = image_size // patch_size so the
    #   post-LayerNorm shape check on the identity-encoder output holds.
    cfg = dict(
        hidden_size=16,
        num_channels=4,
        image_size=32,
        patch_size=2,
        layer_norm_eps=1e-6,
    )
    B = 2
    C = cfg["num_channels"]
    p = cfg["patch_size"]
    img = cfg["image_size"]
    num_patches = (img // p) ** 2          # 256 -> conv out_channels (embed_dim)

    key = jax.random.PRNGKey(0)
    k_x, k_w, k_b, k_g, k_beta = jax.random.split(key, 5)

    pixel_values = jax.random.normal(k_x, (B, C, img, img), dtype=jnp.float32)
    params = {
        "conv_w": jax.random.normal(k_w, (num_patches, C, p, p), dtype=jnp.float32) * 0.1,
        "conv_b": jax.random.normal(k_b, (num_patches,), dtype=jnp.float32) * 0.1,
        "ln_gamma": 1.0 + 0.1 * jax.random.normal(k_g, (cfg["hidden_size"],), dtype=jnp.float32),
        "ln_beta": 0.1 * jax.random.normal(k_beta, (cfg["hidden_size"],), dtype=jnp.float32),
    }

    out = siglip_transformer_forward(pixel_values, params, cfg)
    out = jax.block_until_ready(out)

    ref = _reference_forward(pixel_values, params, cfg)
    assert out.shape == (B, num_patches, img // p, img // p), out.shape
    assert jnp.allclose(out, ref, atol=1e-3, rtol=1e-3), float(jnp.max(jnp.abs(out - ref)))

    print("KERNEL_OK")
</pallas_src>

<mosaic_0001>
module attributes {stable_mosaic.version = 11 : i64} {
  func.func @_patch_conv_ln_kernel(%arg0: i32, %arg1: memref<512x128xf32, #tpu.memory_space<vmem>>, %arg2: memref<128x256xf32, #tpu.memory_space<vmem>>, %arg3: memref<1x256xf32, #tpu.memory_space<vmem>>, %arg4: memref<16x256xf32, #tpu.memory_space<vmem>>, %arg5: memref<16x256xf32, #tpu.memory_space<vmem>>, %arg6: memref<512x256xf32, #tpu.memory_space<vmem>>) attributes {dimension_semantics = [#tpu.dimension_semantics<parallel>], iteration_bounds = array<i64: 1>, scalar_prefetch = 0 : i64, scratch_operands = 0 : i64, tpu.core_type = #tpu.core_type<tc>, window_params = [{transform_indices = @transform_0, window_bounds = array<i64: 512, 128>}, {pipeline_mode = #tpu.pipeline_mode<synchronous>, transform_indices = @transform_1, window_bounds = array<i64: 128, 256>}, {pipeline_mode = #tpu.pipeline_mode<synchronous>, transform_indices = @transform_2, window_bounds = array<i64: 1, 256>}, {pipeline_mode = #tpu.pipeline_mode<synchronous>, transform_indices = @transform_3, window_bounds = array<i64: 16, 256>}, {pipeline_mode = #tpu.pipeline_mode<synchronous>, transform_indices = @transform_4, window_bounds = array<i64: 16, 256>}, {transform_indices = @transform_5, window_bounds = array<i64: 512, 256>}]} {
    %c0 = arith.constant 0 : index
    %c0_0 = arith.constant 0 : index
    %0 = vector.load %arg1[%c0, %c0_0] : memref<512x128xf32, #tpu.memory_space<vmem>>, vector<512x128xf32>
    %c0_1 = arith.constant 0 : index
    %c0_2 = arith.constant 0 : index
    %1 = vector.load %arg2[%c0_1, %c0_2] : memref<128x256xf32, #tpu.memory_space<vmem>>, vector<128x256xf32>
    %cst = arith.constant dense<0.000000e+00> : vector<512x256xf32>
    %2 = tpu.matmul %0, %1, %cst {dimension_numbers = #tpu.dot_dimension_numbers<[1], [0], [0], [1], [0, 0, 1, 1], [], []>} : vector<512x128xf32>, vector<128x256xf32>, vector<512x256xf32> -> vector<512x256xf32>
    %c0_3 = arith.constant 0 : index
    %c0_4 = arith.constant 0 : index
    %3 = vector.load %arg3[%c0_3, %c0_4] : memref<1x256xf32, #tpu.memory_space<vmem>>, vector<1x256xf32>
    %4 = vector.broadcast %3 : vector<1x256xf32> to vector<512x256xf32>
    %5 = arith.addf %2, %4 : vector<512x256xf32>
    %6 = vector.shape_cast %5 : vector<512x256xf32> to vector<32x16x256xf32>
    %cst_5 = arith.constant dense<0.000000e+00> : vector<32x256xf32>
    %7 = vector.multi_reduction <add>, %6, %cst_5 [1] : vector<32x16x256xf32> to vector<32x256xf32>
    %8 = vector.shape_cast %7 : vector<32x256xf32> to vector<32x1x256xf32>
    %cst_6 = arith.constant 1.600000e+01 : f32
    %9 = vector.broadcast %cst_6 : f32 to vector<32x1x256xf32>
    %10 = arith.divf %8, %9 : vector<32x1x256xf32>
    %11 = vector.broadcast %10 : vector<32x1x256xf32> to vector<32x16x256xf32>
    %12 = arith.subf %6, %11 : vector<32x16x256xf32>
    %13 = arith.mulf %12, %12 : vector<32x16x256xf32>
    %cst_7 = arith.constant dense<0.000000e+00> : vector<32x256xf32>
    %14 = vector.multi_reduction <add>, %13, %cst_7 [1] : vector<32x16x256xf32> to vector<32x256xf32>
    %15 = vector.shape_cast %14 : vector<32x256xf32> to vector<32x1x256xf32>
    %cst_8 = arith.constant 1.600000e+01 : f32
    %16 = vector.broadcast %cst_8 : f32 to vector<32x1x256xf32>
    %17 = arith.divf %15, %16 : vector<32x1x256xf32>
    %cst_9 = arith.constant 9.99999997E-7 : f32
    %18 = vector.broadcast %cst_9 : f32 to vector<32x1x256xf32>
    %19 = arith.addf %17, %18 : vector<32x1x256xf32>
    %20 = math.rsqrt %19 : vector<32x1x256xf32>
    %21 = vector.broadcast %20 : vector<32x1x256xf32> to vector<32x16x256xf32>
    %22 = arith.mulf %12, %21 : vector<32x16x256xf32>
    %c0_10 = arith.constant 0 : index
    %c0_11 = arith.constant 0 : index
    %23 = vector.load %arg4[%c0_10, %c0_11] : memref<16x256xf32, #tpu.memory_space<vmem>>, vector<16x256xf32>
    %24 = vector.shape_cast %23 : vector<16x256xf32> to vector<1x16x256xf32>
    %25 = vector.broadcast %24 : vector<1x16x256xf32> to vector<32x16x256xf32>
    %26 = arith.mulf %22, %25 : vector<32x16x256xf32>
    %c0_12 = arith.constant 0 : index
    %c0_13 = arith.constant 0 : index
    %27 = vector.load %arg5[%c0_12, %c0_13] : memref<16x256xf32, #tpu.memory_space<vmem>>, vector<16x256xf32>
    %28 = vector.shape_cast %27 : vector<16x256xf32> to vector<1x16x256xf32>
    %29 = vector.broadcast %28 : vector<1x16x256xf32> to vector<32x16x256xf32>
    %30 = arith.addf %26, %29 : vector<32x16x256xf32>
    %31 = vector.shape_cast %30 : vector<32x16x256xf32> to vector<512x256xf32>
    %c0_14 = arith.constant 0 : index
    %c0_15 = arith.constant 0 : index
    %32 = vector.load %arg6[%c0_14, %c0_15] : memref<512x256xf32, #tpu.memory_space<vmem>>, vector<512x256xf32>
    tpu.vector_store %arg6[%c0_14, %c0_15], %31 {strides = array<i32>} : memref<512x256xf32, #tpu.memory_space<vmem>>, vector<512x256xf32>,
    return
  }
  func.func @transform_0(%arg0: i32) -> (i32, i32) {
    %c0_i32 = arith.constant 0 : i32
    %c0_i32_0 = arith.constant 0 : i32
    return %arg0, %c0_i32 : i32, i32
  }
  func.func @transform_1(%arg0: i32) -> (i32, i32) {
    %c0_i32 = arith.constant 0 : i32
    %c0_i32_0 = arith.constant 0 : i32
    %c0_i32_1 = arith.constant 0 : i32
    return %c0_i32, %c0_i32_0 : i32, i32
  }
  func.func @transform_2(%arg0: i32) -> (i32, i32) {
    %c0_i32 = arith.constant 0 : i32
    %c0_i32_0 = arith.constant 0 : i32
    %c0_i32_1 = arith.constant 0 : i32
    return %c0_i32, %c0_i32_0 : i32, i32
  }
  func.func @transform_3(%arg0: i32) -> (i32, i32) {
    %c0_i32 = arith.constant 0 : i32
    %c0_i32_0 = arith.constant 0 : i32
    %c0_i32_1 = arith.constant 0 : i32
    return %c0_i32, %c0_i32_0 : i32, i32
  }
  func.func @transform_4(%arg0: i32) -> (i32, i32) {
    %c0_i32 = arith.constant 0 : i32
    %c0_i32_0 = arith.constant 0 : i32
    %c0_i32_1 = arith.constant 0 : i32
    return %c0_i32, %c0_i32_0 : i32, i32
  }
  func.func @transform_5(%arg0: i32) -> (i32, i32) {
    %c0_i32 = arith.constant 0 : i32
    %c0_i32_0 = arith.constant 0 : i32
    return %arg0, %c0_i32 : i32, i32
  }
}

</mosaic_0001>

<llo_original>
// kernel: tpu_custom_call.1
$region0: #{tpu_custom_call.1}
  #allocation0 [shape = 'u32[]', space=smem, size = 0x4, offset = 0x4, fixed_abs, tag = 'smem constant byte address 0x4 - core index']
  #allocation1 [shape = 'u32[72,128]{1,0:T(1,128)}', space=vmem, size = 0x9000, scoped, tag = 'internal scratch']
  %s0 = inlined_call_operand.hbm [shape: f32[512,128], index: 0, kind: input, shape index: {}]
  %s1 = inlined_call_operand.hbm [shape: f32[128,256], index: 1, kind: input, shape index: {}]
  %s2 = inlined_call_operand.hbm [shape: f32[1,256], index: 2, kind: input, shape index: {}]
  %s3 = inlined_call_operand.hbm [shape: f32[16,256], index: 3, kind: input, shape index: {}]
  %s4 = inlined_call_operand.hbm [shape: f32[16,256], index: 4, kind: input, shape index: {}]
  %s5 = inlined_call_operand.hbm [shape: f32[512,256], index: 5, kind: output, shape index: {}]
  %s6 = sld [smem:[#allocation0]]
  $region50: #{tpu_custom_call.1} parent=0
    _
  %s8 = ssub.s32 1, %s6
  %s9 = scalar_select 0, %s8, %s6
  $region1: #{tpu_custom_call.1} parent=0
    #allocation2 [shape = 'u8[262144]{0}', space=vmem, size = 0x40000, scoped, tag = 'input window, operand 0, single buffered']
    #allocation3 [shape = 's32[1]{0}', space=sflag, size = 0x4, scoped, tag = 'scoped memory for tpu_custom_call.1']
    #allocation4 [shape = 's32[1]{0}', space=sflag, size = 0x4, scoped, tag = 'scoped memory for tpu_custom_call.1']
    #allocation5 [shape = 'u8[131072]{0}', space=vmem, size = 0x20000, scoped, tag = 'input window, operand 1, single buffered']
    #allocation6 [shape = 's32[1]{0}', space=sflag, size = 0x4, scoped, tag = 'scoped memory for tpu_custom_call.1']
    #allocation7 [shape = 'u8[1024]{0}', space=vmem, size = 0x400, scoped, tag = 'input window, operand 2, single buffered']
    #allocation8 [shape = 'u8[16384]{0}', space=vmem, size = 0x4000, scoped, tag = 'input window, operand 3, single buffered']
    #allocation9 [shape = 's32[1]{0}', space=sflag, size = 0x4, scoped, tag = 'scoped memory for tpu_custom_call.1']
    #allocation10 [shape = 'u8[16384]{0}', space=vmem, size = 0x4000, scoped, tag = 'input window, operand 4, single buffered']
    #allocation11 [shape = 'u8[524288]{0}', space=vmem, size = 0x80000, scoped, tag = 'output window, operand 0, single buffered']
    %10 = vsyncpa [#allocation3], 0
    %11 = vsyncpa [#allocation6], 0
    %12 = vsyncpa [#allocation9], 0
    %13 = vsyncpa [#allocation4], 0
    // Predicated region
    $region2: #{tpu_custom_call.1} parent=1 // pred_check
      _
    $region3: #{tpu_custom_call.1} parent=1 // pred_check_branch
      %15 = sbr.rel (0) target = $region5
    $region4: #{tpu_custom_call.1} parent=1 // pred_region
      %17 = vsyncadd [#allocation3], 0
      %s18 = sshll.u32 %s0, 4
      %s19 = int_to_ptr.hbm [resolvable:$true] %s18
      %s20 = sshll.u32 [#allocation2], 4
      %s21 = int_to_ptr.vmem [resolvable:$true] %s20
      %26 = dma.hbm_to_vmem [thread:$0]  %s19, 8192, %s21, [#allocation3], 128, 128, 8
    $region5: #{tpu_custom_call.1} parent=1 // pred_fallthru
      _
    // Predicated region
    $region6: #{tpu_custom_call.1} parent=1 // pred_check
      _
    $region7: #{tpu_custom_call.1} parent=1 // pred_check_branch
      %28 = sbr.rel (0) target = $region9
    $region8: #{tpu_custom_call.1} parent=1 // pred_region
      %30 = vsyncadd [#allocation6], 0
      %s31 = sshll.u32 %s1, 4
      %s32 = int_to_ptr.hbm [resolvable:$true] %s31
      %s33 = sshll.u32 [#allocation5], 4
      %s34 = int_to_ptr.vmem [resolvable:$true] %s33
      %39 = dma.hbm_to_vmem [thread:$0]  %s32, 4096, %s34, [#allocation6], 256, 256, 16
    $region9: #{tpu_custom_call.1} parent=1 // pred_fallthru
      _
    // Predicated region
    $region10: #{tpu_custom_call.1} parent=1 // pred_check
      _
    $region11: #{tpu_custom_call.1} parent=1 // pred_check_branch
      %41 = sbr.rel (0) target = $region13
    $region12: #{tpu_custom_call.1} parent=1 // pred_region
      %43 = vsyncadd [#allocation6], 0
      %s45 = sshll.u32 %s2, 4
      %s46 = int_to_ptr.hbm [resolvable:$true] %s45
      %s47 = sshll.u32 [#allocation7], 4
      %s48 = int_to_ptr.vmem [resolvable:$true] %s47
      %50 = dma.hbm_to_vmem [thread:$0]  %s46, 32, %s48, [#allocation6]
    $region13: #{tpu_custom_call.1} parent=1 // pred_fallthru
      _
    // Predicated region
    $region14: #{tpu_custom_call.1} parent=1 // pred_check
      _
    $region15: #{tpu_custom_call.1} parent=1 // pred_check_branch
      %52 = sbr.rel (0) target = $region17
    $region16: #{tpu_custom_call.1} parent=1 // pred_region
      %54 = vsyncadd [#allocation9], 0
      %s55 = sshll.u32 %s3, 4
      %s56 = int_to_ptr.hbm [resolvable:$true] %s55
      %s57 = sshll.u32 [#allocation8], 4
      %s58 = int_to_ptr.vmem [resolvable:$true] %s57
      %63 = dma.hbm_to_vmem [thread:$0]  %s56, 512, %s58, [#allocation9], 256, 256, 16
    $region17: #{tpu_custom_call.1} parent=1 // pred_fallthru
      _
    // Predicated region
    $region18: #{tpu_custom_call.1} parent=1 // pred_check
      _
    $region19: #{tpu_custom_call.1} parent=1 // pred_check_branch
      %65 = sbr.rel (0) target = $region21
    $region20: #{tpu_custom_call.1} parent=1 // pred_region
      %67 = vsyncadd [#allocation9], 0
      %s68 = sshll.u32 %s4, 4
      %s69 = int_to_ptr.hbm [resolvable:$true] %s68
      %s70 = sshll.u32 [#allocation10], 4
      %s71 = int_to_ptr.vmem [resolvable:$true] %s70
      %76 = dma.hbm_to_vmem [thread:$0]  %s69, 512, %s71, [#allocation9], 256, 256, 16
    $region21: #{tpu_custom_call.1} parent=1 // pred_fallthru
      _
    // Predicated region
    $region22: #{tpu_custom_call.1} parent=1 // pred_check
      _
    $region23: #{tpu_custom_call.1} parent=1 // pred_check_branch
      %78 = sbr.rel (0) target = $region25
    $region24: #{tpu_custom_call.1} parent=1 // pred_region
      %80 = dma.done [#allocation3], 8192
    $region25: #{tpu_custom_call.1} parent=1 // pred_fallthru
      _
    // Predicated region
    $region26: #{tpu_custom_call.1} parent=1 // pred_check
      _
    $region27: #{tpu_custom_call.1} parent=1 // pred_check_branch
      %82 = sbr.rel (0) target = $region29
    $region28: #{tpu_custom_call.1} parent=1 // pred_region
      %84 = dma.done [#allocation6], 4096
    $region29: #{tpu_custom_call.1} parent=1 // pred_fallthru
      _
    // Predicated region
    $region30: #{tpu_custom_call.1} parent=1 // pred_check
      _
    $region31: #{tpu_custom_call.1} parent=1 // pred_check_branch
      %86 = sbr.rel (0) target = $region33
    $region32: #{tpu_custom_call.1} parent=1 // pred_region
      %88 = dma.done [#allocation6], 32
    $region33: #{tpu_custom_call.1} parent=1 // pred_fallthru
      _
    // Predicated region
    $region34: #{tpu_custom_call.1} parent=1 // pred_check
      _
    $region35: #{tpu_custom_call.1} parent=1 // pred_check_branch
      %90 = sbr.rel (0) target = $region37
    $region36: #{tpu_custom_call.1} parent=1 // pred_region
      %92 = dma.done [#allocation9], 512
    $region37: #{tpu_custom_call.1} parent=1 // pred_fallthru
      _
    // Predicated region
    $region38: #{tpu_custom_call.1} parent=1 // pred_check
      _
    $region39: #{tpu_custom_call.1} parent=1 // pred_check_branch
      %94 = sbr.rel (0) target = $region41
    $region40: #{tpu_custom_call.1} parent=1 // pred_region
      %96 = dma.done [#allocation9], 512
    $region41: #{tpu_custom_call.1} parent=1 // pred_fallthru
      _
    %v97 = vld [vmem:[#allocation2] sm:$0xff]
    %v98 = vld [vmem:[#allocation2 + $0x8] sm:$0xff]
    %v99 = vld [vmem:[#allocation2 + $0x10] sm:$0xff]
    %v100 = vld [vmem:[#allocation2 + $0x18] sm:$0xff]
    %v101 = vld [vmem:[#allocation2 + $0x20] sm:$0xff]
    %v102 = vld [vmem:[#allocation2 + $0x28] sm:$0xff]
    %v103 = vld [vmem:[#allocation2 + $0x30] sm:$0xff]
    %v104 = vld [vmem:[#allocation2 + $0x38] sm:$0xff]
    %v105 = vld [vmem:[#allocation2 + $0x40] sm:$0xff]
    %v106 = vld [vmem:[#allocation2 + $0x48] sm:$0xff]
    %v107 = vld [vmem:[#allocation2 + $0x50] sm:$0xff]
    %v108 = vld [vmem:[#allocation2 + $0x58] sm:$0xff]
    %v109 = vld [vmem:[#allocation2 + $0x60] sm:$0xff]
    %v110 = vld [vmem:[#allocation2 + $0x68] sm:$0xff]
    %v111 = vld [vmem:[#allocation2 + $0x70] sm:$0xff]
    %v112 = vld [vmem:[#allocation2 + $0x78] sm:$0xff]
    %v113 = vld [vmem:[#allocation2 + $0x80] sm:$0xff]
    %v114 = vld [vmem:[#allocation2 + $0x88] sm:$0xff]
    %v115 = vld [vmem:[#allocation2 + $0x90] sm:$0xff]
    %v116 = vld [vmem:[#allocation2 + $0x98] sm:$0xff]
    %v117 = vld [vmem:[#allocation2 + $0xa0] sm:$0xff]
    %v118 = vld [vmem:[#allocation2 + $0xa8] sm:$0xff]
    %v119 = vld [vmem:[#allocation2 + $0xb0] sm:$0xff]
    %v120 = vld [vmem:[#allocation2 + $0xb8] sm:$0xff]
    %v121 = vld [vmem:[#allocation2 + $0xc0] sm:$0xff]
    %v122 = vld [vmem:[#allocation2 + $0xc8] sm:$0xff]
    %v123 = vld [vmem:[#allocation2 + $0xd0] sm:$0xff]
    %v124 = vld [vmem:[#allocation2 + $0xd8] sm:$0xff]
    %v125 = vld [vmem:[#allocation2 + $0xe0] sm:$0xff]
    %v126 = vld [vmem:[#allocation2 + $0xe8] sm:$0xff]
    %v127 = vld [vmem:[#allocation2 + $0xf0] sm:$0xff]
    %v128 = vld [vmem:[#allocation2 + $0xf8] sm:$0xff]
    %v129 = vld [vmem:[#allocation2 + $0x100] sm:$0xff]
    %v130 = vld [vmem:[#allocation2 + $0x108] sm:$0xff]
    %v131 = vld [vmem:[#allocation2 + $0x110] sm:$0xff]
    %v132 = vld [vmem:[#allocation2 + $0x118] sm:$0xff]
    %v133 = vld [vmem:[#allocation2 + $0x120] sm:$0xff]
    %v134 = vld [vmem:[#allocation2 + $0x128] sm:$0xff]
    %v135 = vld [vmem:[#allocation2 + $0x130] sm:$0xff]
    %v136 = vld [vmem:[#allocation2 + $0x138] sm:$0xff]
    %v137 = vld [vmem:[#allocation2 + $0x140] sm:$0xff]
    %v138 = vld [vmem:[#allocation2 + $0x148] sm:$0xff]
    %v139 = vld [vmem:[#allocation2 + $0x150] sm:$0xff]
    %v140 = vld [vmem:[#allocation2 + $0x158] sm:$0xff]
    %v141 = vld [vmem:[#allocation2 + $0x160] sm:$0xff]
    %v142 = vld [vmem:[#allocation2 + $0x168] sm:$0xff]
    %v143 = vld [vmem:[#allocation2 + $0x170] sm:$0xff]
    %v144 = vld [vmem:[#allocation2 + $0x178] sm:$0xff]
    %v145 = vld [vmem:[#allocation2 + $0x180] sm:$0xff]
    %v146 = vld [vmem:[#allocation2 + $0x188] sm:$0xff]
    %v147 = vld [vmem:[#allocation2 + $0x190] sm:$0xff]
    %v148 = vld [vmem:[#allocation2 + $0x198] sm:$0xff]
    %v149 = vld [vmem:[#allocation2 + $0x1a0] sm:$0xff]
    %v150 = vld [vmem:[#allocation2 + $0x1a8] sm:$0xff]
    %v151 = vld [vmem:[#allocation2 + $0x1b0] sm:$0xff]
    %v152 = vld [vmem:[#allocation2 + $0x1b8] sm:$0xff]
    %v153 = vld [vmem:[#allocation2 + $0x1c0] sm:$0xff]
    %v154 = vld [vmem:[#allocation2 + $0x1c8] sm:$0xff]
    %v155 = vld [vmem:[#allocation2 + $0x1d0] sm:$0xff]
    %v156 = vld [vmem:[#allocation2 + $0x1d8] sm:$0xff]
    %v157 = vld [vmem:[#allocation2 + $0x1e0] sm:$0xff]
    %v158 = vld [vmem:[#allocation2 + $0x1e8] sm:$0xff]
    %v159 = vld [vmem:[#allocation2 + $0x1f0] sm:$0xff]
    %v160 = vld [vmem:[#allocation2 + $0x1f8] sm:$0xff]
    %v161 = vld [vmem:[#allocation5] sm:$0xff]
    %v162 = vld [vmem:[#allocation5 + $0x8] sm:$0xff]
    %v163 = vld [vmem:[#allocation5 + $0x10] sm:$0xff]
    %v164 = vld [vmem:[#allocation5 + $0x18] sm:$0xff]
    %v165 = vld [vmem:[#allocation5 + $0x20] sm:$0xff]
    %v166 = vld [vmem:[#allocation5 + $0x28] sm:$0xff]
    %v167 = vld [vmem:[#allocation5 + $0x30] sm:$0xff]
    %v168 = vld [vmem:[#allocation5 + $0x38] sm:$0xff]
    %v169 = vld [vmem:[#allocation5 + $0x40] sm:$0xff]
    %v170 = vld [vmem:[#allocation5 + $0x48] sm:$0xff]
    %v171 = vld [vmem:[#allocation5 + $0x50] sm:$0xff]
    %v172 = vld [vmem:[#allocation5 + $0x58] sm:$0xff]
    %v173 = vld [vmem:[#allocation5 + $0x60] sm:$0xff]
    %v174 = vld [vmem:[#allocation5 + $0x68] sm:$0xff]
    %v175 = vld [vmem:[#allocation5 + $0x70] sm:$0xff]
    %v176 = vld [vmem:[#allocation5 + $0x78] sm:$0xff]
    %v177 = vld [vmem:[#allocation5 + $0x80] sm:$0xff]
    %v178 = vld [vmem:[#allocation5 + $0x88] sm:$0xff]
    %v179 = vld [vmem:[#allocation5 + $0x90] sm:$0xff]
    %v180 = vld [vmem:[#allocation5 + $0x98] sm:$0xff]
    %v181 = vld [vmem:[#allocation5 + $0xa0] sm:$0xff]
    %v182 = vld [vmem:[#allocation5 + $0xa8] sm:$0xff]
    %v183 = vld [vmem:[#allocation5 + $0xb0] sm:$0xff]
    %v184 = vld [vmem:[#allocation5 + $0xb8] sm:$0xff]
    %v185 = vld [vmem:[#allocation5 + $0xc0] sm:$0xff]
    %v186 = vld [vmem:[#allocation5 + $0xc8] sm:$0xff]
    %v187 = vld [vmem:[#allocation5 + $0xd0] sm:$0xff]
    %v188 = vld [vmem:[#allocation5 + $0xd8] sm:$0xff]
    %v189 = vld [vmem:[#allocation5 + $0xe0] sm:$0xff]
    %v190 = vld [vmem:[#allocation5 + $0xe8] sm:$0xff]
    %v191 = vld [vmem:[#allocation5 + $0xf0] sm:$0xff]
    %v192 = vld [vmem:[#allocation5 + $0xf8] sm:$0xff]
    %v193 = vld [vmem:[#allocation7] sm:$0x3]
    %v195 = vperm.slane %v193, 0
    %v196 = vperm.slane %v193, 1
    %199 = vmatpush.msra.mxu0 %v191
    %200 = vmatpush.msra.mxu0 %v189
    %201 = vmatpush.msra.mxu0 %v187
    %202 = vmatpush.msra.mxu0 %v185
    %203 = vmatpush.msra.mxu0 %v183
    %204 = vmatpush.msra.mxu0 %v181
    %205 = vmatpush.msra.mxu0 %v179
    %206 = vmatpush.msra.mxu0 %v177
    %207 = vmatpush.msra.mxu0 %v175
    %208 = vmatpush.msra.mxu0 %v173
    %209 = vmatpush.msra.mxu0 %v171
    %210 = vmatpush.msra.mxu0 %v169
    %211 = vmatpush.msra.mxu0 %v167
    %212 = vmatpush.msra.mxu0 %v165
    %213 = vmatpush.msra.mxu0 %v163
    %214 = vmatpush.msra.mxu0 %v161
    %215 = vmatmul.f32.gmra.mxu0 %v97
    %v216 = vpop.f32.mrf.mxu0
    %v217 = vadd.f32 %v195, %v216
    %218 = vmatmul.f32.gmra.mxu0 %v98
    %v219 = vpop.f32.mrf.mxu0
    %v220 = vadd.f32 %v195, %v219
    %221 = vmatmul.f32.gmra.mxu0 %v99
    %v222 = vpop.f32.mrf.mxu0
    %v223 = vadd.f32 %v195, %v222
    %224 = vmatmul.f32.gmra.mxu0 %v100
    %v225 = vpop.f32.mrf.mxu0
    %v226 = vadd.f32 %v195, %v225
    %227 = vmatmul.f32.gmra.mxu0 %v101
    %v228 = vpop.f32.mrf.mxu0
    %v229 = vadd.f32 %v195, %v228
    %230 = vmatmul.f32.gmra.mxu0 %v102
    %v231 = vpop.f32.mrf.mxu0
    %v232 = vadd.f32 %v195, %v231
    %233 = vmatmul.f32.gmra.mxu0 %v103
    %v234 = vpop.f32.mrf.mxu0
    %v235 = vadd.f32 %v195, %v234
    %236 = vmatmul.f32.gmra.mxu0 %v104
    %v237 = vpop.f32.mrf.mxu0
    %v238 = vadd.f32 %v195, %v237
    %239 = vmatmul.f32.gmra.mxu0 %v105
    %v240 = vpop.f32.mrf.mxu0
    %v241 = vadd.f32 %v195, %v240
    %242 = vmatmul.f32.gmra.mxu0 %v106
    %v243 = vpop.f32.mrf.mxu0
    %v244 = vadd.f32 %v195, %v243
    %245 = vmatmul.f32.gmra.mxu0 %v107
    %v246 = vpop.f32.mrf.mxu0
    %v247 = vadd.f32 %v195, %v246
    %248 = vmatmul.f32.gmra.mxu0 %v108
    %v249 = vpop.f32.mrf.mxu0
    %v250 = vadd.f32 %v195, %v249
    %251 = vmatmul.f32.gmra.mxu0 %v109
    %v252 = vpop.f32.mrf.mxu0
    %v253 = vadd.f32 %v195, %v252
    %254 = vmatmul.f32.gmra.mxu0 %v110
    %v255 = vpop.f32.mrf.mxu0
    %v256 = vadd.f32 %v195, %v255
    %257 = vmatmul.f32.gmra.mxu0 %v111
    %v258 = vpop.f32.mrf.mxu0
    %v259 = vadd.f32 %v195, %v258
    %260 = vmatmul.f32.gmra.mxu0 %v112
    %v261 = vpop.f32.mrf.mxu0
    %v262 = vadd.f32 %v195, %v261
    %263 = vmatmul.f32.gmra.mxu0 %v113
    %v264 = vpop.f32.mrf.mxu0
    %v265 = vadd.f32 %v195, %v264
    %266 = vmatmul.f32.gmra.mxu0 %v114
    %v267 = vpop.f32.mrf.mxu0
    %v268 = vadd.f32 %v195, %v267
    %269 = vmatmul.f32.gmra.mxu0 %v115
    %v270 = vpop.f32.mrf.mxu0
    %v271 = vadd.f32 %v195, %v270
    %272 = vmatmul.f32.gmra.mxu0 %v116
    %v273 = vpop.f32.mrf.mxu0
    %v274 = vadd.f32 %v195, %v273
    %275 = vmatmul.f32.gmra.mxu0 %v117
    %v276 = vpop.f32.mrf.mxu0
    %v277 = vadd.f32 %v195, %v276
    %278 = vmatmul.f32.gmra.mxu0 %v118
    %v279 = vpop.f32.mrf.mxu0
    %v280 = vadd.f32 %v195, %v279
    %281 = vmatmul.f32.gmra.mxu0 %v119
    %v282 = vpop.f32.mrf.mxu0
    %v283 = vadd.f32 %v195, %v282
    %284 = vmatmul.f32.gmra.mxu0 %v120
    %v285 = vpop.f32.mrf.mxu0
    %v286 = vadd.f32 %v195, %v285
    %287 = vmatmul.f32.gmra.mxu0 %v121
    %v288 = vpop.f32.mrf.mxu0
    %v289 = vadd.f32 %v195, %v288
    %290 = vmatmul.f32.gmra.mxu0 %v122
    %v291 = vpop.f32.mrf.mxu0
    %v292 = vadd.f32 %v195, %v291
    %293 = vmatmul.f32.gmra.mxu0 %v123
    %v294 = vpop.f32.mrf.mxu0
    %v295 = vadd.f32 %v195, %v294
    %296 = vmatmul.f32.gmra.mxu0 %v124
    %v297 = vpop.f32.mrf.mxu0
    %v298 = vadd.f32 %v195, %v297
    %299 = vmatmul.f32.gmra.mxu0 %v125
    %v300 = vpop.f32.mrf.mxu0
    %v301 = vadd.f32 %v195, %v300
    %302 = vmatmul.f32.gmra.mxu0 %v126
    %v303 = vpop.f32.mrf.mxu0
    %v304 = vadd.f32 %v195, %v303
    %305 = vmatmul.f32.gmra.mxu0 %v127
    %v306 = vpop.f32.mrf.mxu0
    %v307 = vadd.f32 %v195, %v306
    %308 = vmatmul.f32.gmra.mxu0 %v128
    %v309 = vpop.f32.mrf.mxu0
    %v310 = vadd.f32 %v195, %v309
    %311 = vmatmul.f32.gmra.mxu0 %v129
    %v312 = vpop.f32.mrf.mxu0
    %v313 = vadd.f32 %v195, %v312
    %314 = vmatmul.f32.gmra.mxu0 %v130
    %v315 = vpop.f32.mrf.mxu0
    %v316 = vadd.f32 %v195, %v315
    %317 = vmatmul.f32.gmra.mxu0 %v131
    %v318 = vpop.f32.mrf.mxu0
    %v319 = vadd.f32 %v195, %v318
    %320 = vmatmul.f32.gmra.mxu0 %v132
    %v321 = vpop.f32.mrf.mxu0
    %v322 = vadd.f32 %v195, %v321
    %323 = vmatmul.f32.gmra.mxu0 %v133
    %v324 = vpop.f32.mrf.mxu0
    %v325 = vadd.f32 %v195, %v324
    %326 = vmatmul.f32.gmra.mxu0 %v134
    %v327 = vpop.f32.mrf.mxu0
    %v328 = vadd.f32 %v195, %v327
    %329 = vmatmul.f32.gmra.mxu0 %v135
    %v330 = vpop.f32.mrf.mxu0
    %v331 = vadd.f32 %v195, %v330
    %332 = vmatmul.f32.gmra.mxu0 %v136
    %v333 = vpop.f32.mrf.mxu0
    %v334 = vadd.f32 %v195, %v333
    %335 = vmatmul.f32.gmra.mxu0 %v137
    %v336 = vpop.f32.mrf.mxu0
    %v337 = vadd.f32 %v195, %v336
    %338 = vmatmul.f32.gmra.mxu0 %v138
    %v339 = vpop.f32.mrf.mxu0
    %v340 = vadd.f32 %v195, %v339
    %341 = vmatmul.f32.gmra.mxu0 %v139
    %v342 = vpop.f32.mrf.mxu0
    %v343 = vadd.f32 %v195, %v342
    %344 = vmatmul.f32.gmra.mxu0 %v140
    %v345 = vpop.f32.mrf.mxu0
    %v346 = vadd.f32 %v195, %v345
    %347 = vmatmul.f32.gmra.mxu0 %v141
    %v348 = vpop.f32.mrf.mxu0
    %v349 = vadd.f32 %v195, %v348
    %350 = vmatmul.f32.gmra.mxu0 %v142
    %v351 = vpop.f32.mrf.mxu0
    %v352 = vadd.f32 %v195, %v351
    %353 = vmatmul.f32.gmra.mxu0 %v143
    %v354 = vpop.f32.mrf.mxu0
    %v355 = vadd.f32 %v195, %v354
    %356 = vmatmul.f32.gmra.mxu0 %v144
    %v357 = vpop.f32.mrf.mxu0
    %v358 = vadd.f32 %v195, %v357
    %359 = vmatmul.f32.gmra.mxu0 %v145
    %v360 = vpop.f32.mrf.mxu0
    %v361 = vadd.f32 %v195, %v360
    %362 = vmatmul.f32.gmra.mxu0 %v146
    %v363 = vpop.f32.mrf.mxu0
    %v364 = vadd.f32 %v195, %v363
    %365 = vmatmul.f32.gmra.mxu0 %v147
    %v366 = vpop.f32.mrf.mxu0
    %v367 = vadd.f32 %v195, %v366
    %368 = vmatmul.f32.gmra.mxu0 %v148
    %v369 = vpop.f32.mrf.mxu0
    %v370 = vadd.f32 %v195, %v369
    %371 = vmatmul.f32.gmra.mxu0 %v149
    %v372 = vpop.f32.mrf.mxu0
    %v373 = vadd.f32 %v195, %v372
    %374 = vmatmul.f32.gmra.mxu0 %v150
    %v375 = vpop.f32.mrf.mxu0
    %v376 = vadd.f32 %v195, %v375
    %377 = vmatmul.f32.gmra.mxu0 %v151
    %v378 = vpop.f32.mrf.mxu0
    %v379 = vadd.f32 %v195, %v378
    %380 = vmatmul.f32.gmra.mxu0 %v152
    %v381 = vpop.f32.mrf.mxu0
    %v382 = vadd.f32 %v195, %v381
    %383 = vmatmul.f32.gmra.mxu0 %v153
    %v384 = vpop.f32.mrf.mxu0
    %v385 = vadd.f32 %v195, %v384
    %386 = vmatmul.f32.gmra.mxu0 %v154
    %v387 = vpop.f32.mrf.mxu0
    %v388 = vadd.f32 %v195, %v387
    %389 = vmatmul.f32.gmra.mxu0 %v155
    %v390 = vpop.f32.mrf.mxu0
    %v391 = vadd.f32 %v195, %v390
    %392 = vmatmul.f32.gmra.mxu0 %v156
    %v393 = vpop.f32.mrf.mxu0
    %v394 = vadd.f32 %v195, %v393
    %395 = vmatmul.f32.gmra.mxu0 %v157
    %v396 = vpop.f32.mrf.mxu0
    %v397 = vadd.f32 %v195, %v396
    %398 = vmatmul.f32.gmra.mxu0 %v158
    %v399 = vpop.f32.mrf.mxu0
    %v400 = vadd.f32 %v195, %v399
    %401 = vmatmul.f32.gmra.mxu0 %v159
    %v402 = vpop.f32.mrf.mxu0
    %v403 = vadd.f32 %v195, %v402
    %404 = vmatmul.f32.gmra.mxu0 %v160
    %v405 = vpop.f32.mrf.mxu0
    %v406 = vadd.f32 %v195, %v405
    %407 = vdwg.mxu0
    %408 = vmatpush.msra.mxu0 %v192
    %409 = vmatpush.msra.mxu0 %v190
    %410 = vmatpush.msra.mxu0 %v188
    %411 = vmatpush.msra.mxu0 %v186
    %412 = vmatpush.msra.mxu0 %v184
    %413 = vmatpush.msra.mxu0 %v182
    %414 = vmatpush.msra.mxu0 %v180
    %415 = vmatpush.msra.mxu0 %v178
    %416 = vmatpush.msra.mxu0 %v176
    %417 = vmatpush.msra.mxu0 %v174
    %418 = vmatpush.msra.mxu0 %v172
    %419 = vmatpush.msra.mxu0 %v170
    %420 = vmatpush.msra.mxu0 %v168
    %421 = vmatpush.msra.mxu0 %v166
    %422 = vmatpush.msra.mxu0 %v164
    %423 = vmatpush.msra.mxu0 %v162
    %424 = vmatmul.f32.gmra.mxu0 %v97
    %v425 = vpop.f32.mrf.mxu0
    %v426 = vadd.f32 %v196, %v425
    %427 = vmatmul.f32.gmra.mxu0 %v98
    %v428 = vpop.f32.mrf.mxu0
    %v429 = vadd.f32 %v196, %v428
    %430 = vmatmul.f32.gmra.mxu0 %v99
    %v431 = vpop.f32.mrf.mxu0
    %v432 = vadd.f32 %v196, %v431
    %433 = vmatmul.f32.gmra.mxu0 %v100
    %v434 = vpop.f32.mrf.mxu0
    %v435 = vadd.f32 %v196, %v434
    %436 = vmatmul.f32.gmra.mxu0 %v101
    %v437 = vpop.f32.mrf.mxu0
    %v438 = vadd.f32 %v196, %v437
    %439 = vmatmul.f32.gmra.mxu0 %v102
    %v440 = vpop.f32.mrf.mxu0
    %v441 = vadd.f32 %v196, %v440
    %442 = vmatmul.f32.gmra.mxu0 %v103
    %v443 = vpop.f32.mrf.mxu0
    %v444 = vadd.f32 %v196, %v443
    %445 = vmatmul.f32.gmra.mxu0 %v104
    %v446 = vpop.f32.mrf.mxu0
    %v447 = vadd.f32 %v196, %v446
    %448 = vmatmul.f32.gmra.mxu0 %v105
    %v449 = vpop.f32.mrf.mxu0
    %v450 = vadd.f32 %v196, %v449
    %451 = vmatmul.f32.gmra.mxu0 %v106
    %v452 = vpop.f32.mrf.mxu0
    %v453 = vadd.f32 %v196, %v452
    %454 = vmatmul.f32.gmra.mxu0 %v107
    %v455 = vpop.f32.mrf.mxu0
    %v456 = vadd.f32 %v196, %v455
    %457 = vmatmul.f32.gmra.mxu0 %v108
    %v458 = vpop.f32.mrf.mxu0
    %v459 = vadd.f32 %v196, %v458
    %460 = vmatmul.f32.gmra.mxu0 %v109
    %v461 = vpop.f32.mrf.mxu0
    %v462 = vadd.f32 %v196, %v461
    %463 = vmatmul.f32.gmra.mxu0 %v110
    %v464 = vpop.f32.mrf.mxu0
    %v465 = vadd.f32 %v196, %v464
    %466 = vmatmul.f32.gmra.mxu0 %v111
    %v467 = vpop.f32.mrf.mxu0
    %v468 = vadd.f32 %v196, %v467
    %469 = vmatmul.f32.gmra.mxu0 %v112
    %v470 = vpop.f32.mrf.mxu0
    %v471 = vadd.f32 %v196, %v470
    %472 = vmatmul.f32.gmra.mxu0 %v113
    %v473 = vpop.f32.mrf.mxu0
    %v474 = vadd.f32 %v196, %v473
    %475 = vmatmul.f32.gmra.mxu0 %v114
    %v476 = vpop.f32.mrf.mxu0
    %v477 = vadd.f32 %v196, %v476
    %478 = vmatmul.f32.gmra.mxu0 %v115
    %v479 = vpop.f32.mrf.mxu0
    %v480 = vadd.f32 %v196, %v479
    %481 = vmatmul.f32.gmra.mxu0 %v116
    %v482 = vpop.f32.mrf.mxu0
    %v483 = vadd.f32 %v196, %v482
    %484 = vmatmul.f32.gmra.mxu0 %v117
    %v485 = vpop.f32.mrf.mxu0
    %v486 = vadd.f32 %v196, %v485
    %487 = vmatmul.f32.gmra.mxu0 %v118
    %v488 = vpop.f32.mrf.mxu0
    %v489 = vadd.f32 %v196, %v488
    %490 = vmatmul.f32.gmra.mxu0 %v119
    %v491 = vpop.f32.mrf.mxu0
    %v492 = vadd.f32 %v196, %v491
    %493 = vmatmul.f32.gmra.mxu0 %v120
    %v494 = vpop.f32.mrf.mxu0
    %v495 = vadd.f32 %v196, %v494
    %496 = vmatmul.f32.gmra.mxu0 %v121
    %v497 = vpop.f32.mrf.mxu0
    %v498 = vadd.f32 %v196, %v497
    %499 = vmatmul.f32.gmra.mxu0 %v122
    %v500 = vpop.f32.mrf.mxu0
    %v501 = vadd.f32 %v196, %v500
    %502 = vmatmul.f32.gmra.mxu0 %v123
    %v503 = vpop.f32.mrf.mxu0
    %v504 = vadd.f32 %v196, %v503
    %505 = vmatmul.f32.gmra.mxu0 %v124
    %v506 = vpop.f32.mrf.mxu0
    %v507 = vadd.f32 %v196, %v506
    %508 = vmatmul.f32.gmra.mxu0 %v125
    %v509 = vpop.f32.mrf.mxu0
    %v510 = vadd.f32 %v196, %v509
    %511 = vmatmul.f32.gmra.mxu0 %v126
    %v512 = vpop.f32.mrf.mxu0
    %v513 = vadd.f32 %v196, %v512
    %514 = vmatmul.f32.gmra.mxu0 %v127
    %v515 = vpop.f32.mrf.mxu0
    %v516 = vadd.f32 %v196, %v515
    %517 = vmatmul.f32.gmra.mxu0 %v128
    %v518 = vpop.f32.mrf.mxu0
    %v519 = vadd.f32 %v196, %v518
    %520 = vmatmul.f32.gmra.mxu0 %v129
    %v521 = vpop.f32.mrf.mxu0
    %v522 = vadd.f32 %v196, %v521
    %523 = vmatmul.f32.gmra.mxu0 %v130
    %v524 = vpop.f32.mrf.mxu0
    %v525 = vadd.f32 %v196, %v524
    %526 = vmatmul.f32.gmra.mxu0 %v131
    %v527 = vpop.f32.mrf.mxu0
    %v528 = vadd.f32 %v196, %v527
    %529 = vmatmul.f32.gmra.mxu0 %v132
    %v530 = vpop.f32.mrf.mxu0
    %v531 = vadd.f32 %v196, %v530
    %532 = vmatmul.f32.gmra.mxu0 %v133
    %v533 = vpop.f32.mrf.mxu0
    %v534 = vadd.f32 %v196, %v533
    %535 = vmatmul.f32.gmra.mxu0 %v134
    %v536 = vpop.f32.mrf.mxu0
    %v537 = vadd.f32 %v196, %v536
    %538 = vmatmul.f32.gmra.mxu0 %v135
    %v539 = vpop.f32.mrf.mxu0
    %v540 = vadd.f32 %v196, %v539
    %541 = vmatmul.f32.gmra.mxu0 %v136
    %v542 = vpop.f32.mrf.mxu0
    %v543 = vadd.f32 %v196, %v542
    %544 = vmatmul.f32.gmra.mxu0 %v137
    %v545 = vpop.f32.mrf.mxu0
    %v546 = vadd.f32 %v196, %v545
    %547 = vmatmul.f32.gmra.mxu0 %v138
    %v548 = vpop.f32.mrf.mxu0
    %v549 = vadd.f32 %v196, %v548
    %550 = vmatmul.f32.gmra.mxu0 %v139
    %v551 = vpop.f32.mrf.mxu0
    %v552 = vadd.f32 %v196, %v551
    %553 = vmatmul.f32.gmra.mxu0 %v140
    %v554 = vpop.f32.mrf.mxu0
    %v555 = vadd.f32 %v196, %v554
    %556 = vmatmul.f32.gmra.mxu0 %v141
    %v557 = vpop.f32.mrf.mxu0
    %v558 = vadd.f32 %v196, %v557
    %559 = vmatmul.f32.gmra.mxu0 %v142
    %v560 = vpop.f32.mrf.mxu0
    %v561 = vadd.f32 %v196, %v560
    %562 = vmatmul.f32.gmra.mxu0 %v143
    %v563 = vpop.f32.mrf.mxu0
    %v564 = vadd.f32 %v196, %v563
    %565 = vmatmul.f32.gmra.mxu0 %v144
    %v566 = vpop.f32.mrf.mxu0
    %v567 = vadd.f32 %v196, %v566
    %568 = vmatmul.f32.gmra.mxu0 %v145
    %v569 = vpop.f32.mrf.mxu0
    %v570 = vadd.f32 %v196, %v569
    %571 = vmatmul.f32.gmra.mxu0 %v146
    %v572 = vpop.f32.mrf.mxu0
    %v573 = vadd.f32 %v196, %v572
    %574 = vmatmul.f32.gmra.mxu0 %v147
    %v575 = vpop.f32.mrf.mxu0
    %v576 = vadd.f32 %v196, %v575
    %577 = vmatmul.f32.gmra.mxu0 %v148
    %v578 = vpop.f32.mrf.mxu0
    %v579 = vadd.f32 %v196, %v578
    %580 = vmatmul.f32.gmra.mxu0 %v149
    %v581 = vpop.f32.mrf.mxu0
    %v582 = vadd.f32 %v196, %v581
    %583 = vmatmul.f32.gmra.mxu0 %v150
    %v584 = vpop.f32.mrf.mxu0
    %v585 = vadd.f32 %v196, %v584
    %586 = vmatmul.f32.gmra.mxu0 %v151
    %v587 = vpop.f32.mrf.mxu0
    %v588 = vadd.f32 %v196, %v587
    %589 = vmatmul.f32.gmra.mxu0 %v152
    %v590 = vpop.f32.mrf.mxu0
    %v591 = vadd.f32 %v196, %v590
    %592 = vmatmul.f32.gmra.mxu0 %v153
    %v593 = vpop.f32.mrf.mxu0
    %v594 = vadd.f32 %v196, %v593
    %595 = vmatmul.f32.gmra.mxu0 %v154
    %v596 = vpop.f32.mrf.mxu0
    %v597 = vadd.f32 %v196, %v596
    %598 = vmatmul.f32.gmra.mxu0 %v155
    %v599 = vpop.f32.mrf.mxu0
    %v600 = vadd.f32 %v196, %v599
    %601 = vmatmul.f32.gmra.mxu0 %v156
    %v602 = vpop.f32.mrf.mxu0
    %v603 = vadd.f32 %v196, %v602
    %604 = vmatmul.f32.gmra.mxu0 %v157
    %v605 = vpop.f32.mrf.mxu0
    %v606 = vadd.f32 %v196, %v605
    %607 = vmatmul.f32.gmra.mxu0 %v158
    %v608 = vpop.f32.mrf.mxu0
    %v609 = vadd.f32 %v196, %v608
    %610 = vmatmul.f32.gmra.mxu0 %v159
    %v611 = vpop.f32.mrf.mxu0
    %v612 = vadd.f32 %v196, %v611
    %613 = vmatmul.f32.gmra.mxu0 %v160
    %v614 = vpop.f32.mrf.mxu0
    %v615 = vadd.f32 %v196, %v614
    %616 = vdwg.mxu0
    %v617 = vadd.f32 %v217, %v220
    %v618 = vrot.slane %v617, 4
    %v619 = vadd.f32 %v617, %v618
    %v620 = vrot.slane %v619, 2
    %v621 = vadd.f32 %v619, %v620
    %v622 = vrot.slane %v621, 1
    %v623 = vadd.f32 %v621, %v622
    %v624 = vadd.f32 %v426, %v429
    %v625 = vrot.slane %v624, 4
    %v626 = vadd.f32 %v624, %v625
    %v627 = vrot.slane %v626, 2
    %v628 = vadd.f32 %v626, %v627
    %v629 = vrot.slane %v628, 1
    %v630 = vadd.f32 %v628, %v629
    %v631 = vadd.f32 %v223, %v226
    %v632 = vrot.slane %v631, 4
    %v633 = vadd.f32 %v631, %v632
    %v634 = vrot.slane %v633, 2
    %v635 = vadd.f32 %v633, %v634
    %v636 = vrot.slane %v635, 1
    %v637 = vadd.f32 %v635, %v636
    %v638 = vadd.f32 %v432, %v435
    %v639 = vrot.slane %v638, 4
    %v640 = vadd.f32 %v638, %v639
    %v641 = vrot.slane %v640, 2
    %v642 = vadd.f32 %v640, %v641
    %v643 = vrot.slane %v642, 1
    %v644 = vadd.f32 %v642, %v643
    %v645 = vadd.f32 %v229, %v232
    %v646 = vrot.slane %v645, 4
    %v647 = vadd.f32 %v645, %v646
    %v648 = vrot.slane %v647, 2
    %v649 = vadd.f32 %v647, %v648
    %v650 = vrot.slane %v649, 1
    %v651 = vadd.f32 %v649, %v650
    %v652 = vadd.f32 %v438, %v441
    %v653 = vrot.slane %v652, 4
    %v654 = vadd.f32 %v652, %v653
    %v655 = vrot.slane %v654, 2
    %v656 = vadd.f32 %v654, %v655
    %v657 = vrot.slane %v656, 1
    %v658 = vadd.f32 %v656, %v657
    %v659 = vadd.f32 %v235, %v238
    %v660 = vrot.slane %v659, 4
    %v661 = vadd.f32 %v659, %v660
    %v662 = vrot.slane %v661, 2
    %v663 = vadd.f32 %v661, %v662
    %v664 = vrot.slane %v663, 1
    %v665 = vadd.f32 %v663, %v664
    %v666 = vadd.f32 %v444, %v447
    %v667 = vrot.slane %v666, 4
    %v668 = vadd.f32 %v666, %v667
    %v669 = vrot.slane %v668, 2
    %v670 = vadd.f32 %v668, %v669
    %v671 = vrot.slane %v670, 1
    %v672 = vadd.f32 %v670, %v671
    %v673 = vadd.f32 %v241, %v244
    %v674 = vrot.slane %v673, 4
    %v675 = vadd.f32 %v673, %v674
    %v676 = vrot.slane %v675, 2
    %v677 = vadd.f32 %v675, %v676
    %v678 = vrot.slane %v677, 1
    %v679 = vadd.f32 %v677, %v678
    %v680 = vadd.f32 %v450, %v453
    %v681 = vrot.slane %v680, 4
    %v682 = vadd.f32 %v680, %v681
    %v683 = vrot.slane %v682, 2
    %v684 = vadd.f32 %v682, %v683
    %v685 = vrot.slane %v684, 1
    %v686 = vadd.f32 %v684, %v685
    %v687 = vadd.f32 %v247, %v250
    %v688 = vrot.slane %v687, 4
    %v689 = vadd.f32 %v687, %v688
    %v690 = vrot.slane %v689, 2
    %v691 = vadd.f32 %v689, %v690
    %v692 = vrot.slane %v691, 1
    %v693 = vadd.f32 %v691, %v692
    %v694 = vadd.f32 %v456, %v459
    %v695 = vrot.slane %v694, 4
    %v696 = vadd.f32 %v694, %v695
    %v697 = vrot.slane %v696, 2
    %v698 = vadd.f32 %v696, %v697
    %v699 = vrot.slane %v698, 1
    %v700 = vadd.f32 %v698, %v699
    %v701 = vadd.f32 %v253, %v256
    %v702 = vrot.slane %v701, 4
    %v703 = vadd.f32 %v701, %v702
    %v704 = vrot.slane %v703, 2
    %v705 = vadd.f32 %v703, %v704
    %v706 = vrot.slane %v705, 1
    %v707 = vadd.f32 %v705, %v706
    %v708 = vadd.f32 %v462, %v465
    %v709 = vrot.slane %v708, 4
    %v710 = vadd.f32 %v708, %v709
    %v711 = vrot.slane %v710, 2
    %v712 = vadd.f32 %v710, %v711
    %v713 = vrot.slane %v712, 1
    %v714 = vadd.f32 %v712, %v713
    %v715 = vadd.f32 %v259, %v262
    %v716 = vrot.slane %v715, 4
    %v717 = vadd.f32 %v715, %v716
    %v718 = vrot.slane %v717, 2
    %v719 = vadd.f32 %v717, %v718
    %v720 = vrot.slane %v719, 1
    %v721 = vadd.f32 %v719, %v720
    %v722 = vadd.f32 %v468, %v471
    %v723 = vrot.slane %v722, 4
    %v724 = vadd.f32 %v722, %v723
    %v725 = vrot.slane %v724, 2
    %v726 = vadd.f32 %v724, %v725
    %v727 = vrot.slane %v726, 1
    %v728 = vadd.f32 %v726, %v727
    %v729 = vadd.f32 %v265, %v268
    %v730 = vrot.slane %v729, 4
    %v731 = vadd.f32 %v729, %v730
    %v732 = vrot.slane %v731, 2
    %v733 = vadd.f32 %v731, %v732
    %v734 = vrot.slane %v733, 1
    %v735 = vadd.f32 %v733, %v734
    %v736 = vadd.f32 %v474, %v477
    %v737 = vrot.slane %v736, 4
    %v738 = vadd.f32 %v736, %v737
    %v739 = vrot.slane %v738, 2
    %v740 = vadd.f32 %v738, %v739
    %v741 = vrot.slane %v740, 1
    %v742 = vadd.f32 %v740, %v741
    %v743 = vadd.f32 %v271, %v274
    %v744 = vrot.slane %v743, 4
    %v745 = vadd.f32 %v743, %v744
    %v746 = vrot.slane %v745, 2
    %v747 = vadd.f32 %v745, %v746
    %v748 = vrot.slane %v747, 1
    %v749 = vadd.f32 %v747, %v748
    %v750 = vadd.f32 %v480, %v483
    %v751 = vrot.slane %v750, 4
    %v752 = vadd.f32 %v750, %v751
    %v753 = vrot.slane %v752, 2
    %v754 = vadd.f32 %v752, %v753
    %v755 = vrot.slane %v754, 1
    %v756 = vadd.f32 %v754, %v755
    %v757 = vadd.f32 %v277, %v280
    %v758 = vrot.slane %v757, 4
    %v759 = vadd.f32 %v757, %v758
    %v760 = vrot.slane %v759, 2
    %v761 = vadd.f32 %v759, %v760
    %v762 = vrot.slane %v761, 1
    %v763 = vadd.f32 %v761, %v762
    %v764 = vadd.f32 %v486, %v489
    %v765 = vrot.slane %v764, 4
    %v766 = vadd.f32 %v764, %v765
    %v767 = vrot.slane %v766, 2
    %v768 = vadd.f32 %v766, %v767
    %v769 = vrot.slane %v768, 1
    %v770 = vadd.f32 %v768, %v769
    %v771 = vadd.f32 %v283, %v286
    %v772 = vrot.slane %v771, 4
    %v773 = vadd.f32 %v771, %v772
    %v774 = vrot.slane %v773, 2
    %v775 = vadd.f32 %v773, %v774
    %v776 = vrot.slane %v775, 1
    %v777 = vadd.f32 %v775, %v776
    %v778 = vadd.f32 %v492, %v495
    %v779 = vrot.slane %v778, 4
    %v780 = vadd.f32 %v778, %v779
    %v781 = vrot.slane %v780, 2
    %v782 = vadd.f32 %v780, %v781
    %v783 = vrot.slane %v782, 1
    %v784 = vadd.f32 %v782, %v783
    %v785 = vadd.f32 %v289, %v292
    %v786 = vrot.slane %v785, 4
    %v787 = vadd.f32 %v785, %v786
    %v788 = vrot.slane %v787, 2
    %v789 = vadd.f32 %v787, %v788
    %v790 = vrot.slane %v789, 1
    %v791 = vadd.f32 %v789, %v790
    %v792 = vadd.f32 %v498, %v501
    %v793 = vrot.slane %v792, 4
    %v794 = vadd.f32 %v792, %v793
    %v795 = vrot.slane %v794, 2
    %v796 = vadd.f32 %v794, %v795
    %v797 = vrot.slane %v796, 1
    %v798 = vadd.f32 %v796, %v797
    %v799 = vadd.f32 %v295, %v298
    %v800 = vrot.slane %v799, 4
    %v801 = vadd.f32 %v799, %v800
    %v802 = vrot.slane %v801, 2
    %v803 = vadd.f32 %v801, %v802
    %v804 = vrot.slane %v803, 1
    %v805 = vadd.f32 %v803, %v804
    %v806 = vadd.f32 %v504, %v507
    %v807 = vrot.slane %v806, 4
    %v808 = vadd.f32 %v806, %v807
    %v809 = vrot.slane %v808, 2
    %v810 = vadd.f32 %v808, %v809
    %v811 = vrot.slane %v810, 1
    %v812 = vadd.f32 %v810, %v811
    %v813 = vadd.f32 %v301, %v304
    %v814 = vrot.slane %v813, 4
    %v815 = vadd.f32 %v813, %v814
    %v816 = vrot.slane %v815, 2
    %v817 = vadd.f32 %v815, %v816
    %v818 = vrot.slane %v817, 1
    %v819 = vadd.f32 %v817, %v818
    %v820 = vadd.f32 %v510, %v513
    %v821 = vrot.slane %v820, 4
    %v822 = vadd.f32 %v820, %v821
    %v823 = vrot.slane %v822, 2
    %v824 = vadd.f32 %v822, %v823
    %v825 = vrot.slane %v824, 1
    %v826 = vadd.f32 %v824, %v825
    %v827 = vadd.f32 %v307, %v310
    %v828 = vrot.slane %v827, 4
    %v829 = vadd.f32 %v827, %v828
    %v830 = vrot.slane %v829, 2
    %v831 = vadd.f32 %v829, %v830
    %v832 = vrot.slane %v831, 1
    %v833 = vadd.f32 %v831, %v832
    %v834 = vadd.f32 %v516, %v519
    %v835 = vrot.slane %v834, 4
    %v836 = vadd.f32 %v834, %v835
    %v837 = vrot.slane %v836, 2
    %v838 = vadd.f32 %v836, %v837
    %v839 = vrot.slane %v838, 1
    %v840 = vadd.f32 %v838, %v839
    %v841 = vadd.f32 %v313, %v316
    %v842 = vrot.slane %v841, 4
    %v843 = vadd.f32 %v841, %v842
    %v844 = vrot.slane %v843, 2
    %v845 = vadd.f32 %v843, %v844
    %v846 = vrot.slane %v845, 1
    %v847 = vadd.f32 %v845, %v846
    %v848 = vadd.f32 %v522, %v525
    %v849 = vrot.slane %v848, 4
    %v850 = vadd.f32 %v848, %v849
    %v851 = vrot.slane %v850, 2
    %v852 = vadd.f32 %v850, %v851
    %v853 = vrot.slane %v852, 1
    %v854 = vadd.f32 %v852, %v853
    %v855 = vadd.f32 %v319, %v322
    %v856 = vrot.slane %v855, 4
    %v857 = vadd.f32 %v855, %v856
    %v858 = vrot.slane %v857, 2
    %v859 = vadd.f32 %v857, %v858
    %v860 = vrot.slane %v859, 1
    %v861 = vadd.f32 %v859, %v860
    %v862 = vadd.f32 %v528, %v531
    %v863 = vrot.slane %v862, 4
    %v864 = vadd.f32 %v862, %v863
    %v865 = vrot.slane %v864, 2
    %v866 = vadd.f32 %v864, %v865
    %v867 = vrot.slane %v866, 1
    %v868 = vadd.f32 %v866, %v867
    %v869 = vadd.f32 %v325, %v328
    %v870 = vrot.slane %v869, 4
    %v871 = vadd.f32 %v869, %v870
    %v872 = vrot.slane %v871, 2
    %v873 = vadd.f32 %v871, %v872
    %v874 = vrot.slane %v873, 1
    %v875 = vadd.f32 %v873, %v874
    %v876 = vadd.f32 %v534, %v537
    %v877 = vrot.slane %v876, 4
    %v878 = vadd.f32 %v876, %v877
    %v879 = vrot.slane %v878, 2
    %v880 = vadd.f32 %v878, %v879
    %v881 = vrot.slane %v880, 1
    %v882 = vadd.f32 %v880, %v881
    %v883 = vadd.f32 %v331, %v334
    %v884 = vrot.slane %v883, 4
    %v885 = vadd.f32 %v883, %v884
    %v886 = vrot.slane %v885, 2
    %v887 = vadd.f32 %v885, %v886
    %v888 = vrot.slane %v887, 1
    %v889 = vadd.f32 %v887, %v888
    %v890 = vadd.f32 %v540, %v543
    %v891 = vrot.slane %v890, 4
    %v892 = vadd.f32 %v890, %v891
    %v893 = vrot.slane %v892, 2
    %v894 = vadd.f32 %v892, %v893
    %v895 = vrot.slane %v894, 1
    %v896 = vadd.f32 %v894, %v895
    %v897 = vadd.f32 %v337, %v340
    %v898 = vrot.slane %v897, 4
    %v899 = vadd.f32 %v897, %v898
    %v900 = vrot.slane %v899, 2
    %v901 = vadd.f32 %v899, %v900
    %v902 = vrot.slane %v901, 1
    %v903 = vadd.f32 %v901, %v902
    %v904 = vadd.f32 %v546, %v549
    %v905 = vrot.slane %v904, 4
    %v906 = vadd.f32 %v904, %v905
    %v907 = vrot.slane %v906, 2
    %v908 = vadd.f32 %v906, %v907
    %v909 = vrot.slane %v908, 1
    %v910 = vadd.f32 %v908, %v909
    %v911 = vadd.f32 %v343, %v346
    %v912 = vrot.slane %v911, 4
    %v913 = vadd.f32 %v911, %v912
    %v914 = vrot.slane %v913, 2
    %v915 = vadd.f32 %v913, %v914
    %v916 = vrot.slane %v915, 1
    %v917 = vadd.f32 %v915, %v916
    %v918 = vadd.f32 %v552, %v555
    %v919 = vrot.slane %v918, 4
    %v920 = vadd.f32 %v918, %v919
    %v921 = vrot.slane %v920, 2
    %v922 = vadd.f32 %v920, %v921
    %v923 = vrot.slane %v922, 1
    %v924 = vadd.f32 %v922, %v923
    %v925 = vadd.f32 %v349, %v352
    %v926 = vrot.slane %v925, 4
    %v927 = vadd.f32 %v925, %v926
    %v928 = vrot.slane %v927, 2
    %v929 = vadd.f32 %v927, %v928
    %v930 = vrot.slane %v929, 1
    %v931 = vadd.f32 %v929, %v930
    %v932 = vadd.f32 %v558, %v561
    %v933 = vrot.slane %v932, 4
    %v934 = vadd.f32 %v932, %v933
    %v935 = vrot.slane %v934, 2
    %v936 = vadd.f32 %v934, %v935
    %v937 = vrot.slane %v936, 1
    %v938 = vadd.f32 %v936, %v937
    %v939 = vadd.f32 %v355, %v358
    %v940 = vrot.slane %v939, 4
    %v941 = vadd.f32 %v939, %v940
    %v942 = vrot.slane %v941, 2
    %v943 = vadd.f32 %v941, %v942
    %v944 = vrot.slane %v943, 1
    %v945 = vadd.f32 %v943, %v944
    %v946 = vadd.f32 %v564, %v567
    %v947 = vrot.slane %v946, 4
    %v948 = vadd.f32 %v946, %v947
    %v949 = vrot.slane %v948, 2
    %v950 = vadd.f32 %v948, %v949
    %v951 = vrot.slane %v950, 1
    %v952 = vadd.f32 %v950, %v951
    %v953 = vadd.f32 %v361, %v364
    %v954 = vrot.slane %v953, 4
    %v955 = vadd.f32 %v953, %v954
    %v956 = vrot.slane %v955, 2
    %v957 = vadd.f32 %v955, %v956
    %v958 = vrot.slane %v957, 1
    %v959 = vadd.f32 %v957, %v958
    %v960 = vadd.f32 %v570, %v573
    %v961 = vrot.slane %v960, 4
    %v962 = vadd.f32 %v960, %v961
    %v963 = vrot.slane %v962, 2
    %v964 = vadd.f32 %v962, %v963
    %v965 = vrot.slane %v964, 1
    %v966 = vadd.f32 %v964, %v965
    %v967 = vadd.f32 %v367, %v370
    %v968 = vrot.slane %v967, 4
    %v969 = vadd.f32 %v967, %v968
    %v970 = vrot.slane %v969, 2
    %v971 = vadd.f32 %v969, %v970
    %v972 = vrot.slane %v971, 1
    %v973 = vadd.f32 %v971, %v972
    %v974 = vadd.f32 %v576, %v579
    %v975 = vrot.slane %v974, 4
    %v976 = vadd.f32 %v974, %v975
    %v977 = vrot.slane %v976, 2
    %v978 = vadd.f32 %v976, %v977
    %v979 = vrot.slane %v978, 1
    %v980 = vadd.f32 %v978, %v979
    %v981 = vadd.f32 %v373, %v376
    %v982 = vrot.slane %v981, 4
    %v983 = vadd.f32 %v981, %v982
    %v984 = vrot.slane %v983, 2
    %v985 = vadd.f32 %v983, %v984
    %v986 = vrot.slane %v985, 1
    %v987 = vadd.f32 %v985, %v986
    %v988 = vadd.f32 %v582, %v585
    %v989 = vrot.slane %v988, 4
    %v990 = vadd.f32 %v988, %v989
    %v991 = vrot.slane %v990, 2
    %v992 = vadd.f32 %v990, %v991
    %v993 = vrot.slane %v992, 1
    %v994 = vadd.f32 %v992, %v993
    %v995 = vadd.f32 %v379, %v382
    %v996 = vrot.slane %v995, 4
    %v997 = vadd.f32 %v995, %v996
    %v998 = vrot.slane %v997, 2
    %v999 = vadd.f32 %v997, %v998
    %v1000 = vrot.slane %v999, 1
    %v1001 = vadd.f32 %v999, %v1000
    %v1002 = vadd.f32 %v588, %v591
    %v1003 = vrot.slane %v1002, 4
    %v1004 = vadd.f32 %v1002, %v1003
    %v1005 = vrot.slane %v1004, 2
    %v1006 = vadd.f32 %v1004, %v1005
    %v1007 = vrot.slane %v1006, 1
    %v1008 = vadd.f32 %v1006, %v1007
    %v1009 = vadd.f32 %v385, %v388
    %v1010 = vrot.slane %v1009, 4
    %v1011 = vadd.f32 %v1009, %v1010
    %v1012 = vrot.slane %v1011, 2
    %v1013 = vadd.f32 %v1011, %v1012
    %v1014 = vrot.slane %v1013, 1
    %v1015 = vadd.f32 %v1013, %v1014
    %v1016 = vadd.f32 %v594, %v597
    %v1017 = vrot.slane %v1016, 4
    %v1018 = vadd.f32 %v1016, %v1017
    %v1019 = vrot.slane %v1018, 2
    %v1020 = vadd.f32 %v1018, %v1019
    %v1021 = vrot.slane %v1020, 1
    %v1022 = vadd.f32 %v1020, %v1021
    %v1023 = vadd.f32 %v391, %v394
    %v1024 = vrot.slane %v1023, 4
    %v1025 = vadd.f32 %v1023, %v1024
    %v1026 = vrot.slane %v1025, 2
    %v1027 = vadd.f32 %v1025, %v1026
    %v1028 = vrot.slane %v1027, 1
    %v1029 = vadd.f32 %v1027, %v1028
    %v1030 = vadd.f32 %v600, %v603
    %v1031 = vrot.slane %v1030, 4
    %v1032 = vadd.f32 %v1030, %v1031
    %v1033 = vrot.slane %v1032, 2
    %v1034 = vadd.f32 %v1032, %v1033
    %v1035 = vrot.slane %v1034, 1
    %v1036 = vadd.f32 %v1034, %v1035
    %v1037 = vadd.f32 %v397, %v400
    %v1038 = vrot.slane %v1037, 4
    %v1039 = vadd.f32 %v1037, %v1038
    %v1040 = vrot.slane %v1039, 2
    %v1041 = vadd.f32 %v1039, %v1040
    %v1042 = vrot.slane %v1041, 1
    %v1043 = vadd.f32 %v1041, %v1042
    %v1044 = vadd.f32 %v606, %v609
    %v1045 = vrot.slane %v1044, 4
    %v1046 = vadd.f32 %v1044, %v1045
    %v1047 = vrot.slane %v1046, 2
    %v1048 = vadd.f32 %v1046, %v1047
    %v1049 = vrot.slane %v1048, 1
    %v1050 = vadd.f32 %v1048, %v1049
    %v1051 = vadd.f32 %v403, %v406
    %v1052 = vrot.slane %v1051, 4
    %v1053 = vadd.f32 %v1051, %v1052
    %v1054 = vrot.slane %v1053, 2
    %v1055 = vadd.f32 %v1053, %v1054
    %v1056 = vrot.slane %v1055, 1
    %v1057 = vadd.f32 %v1055, %v1056
    %v1058 = vadd.f32 %v612, %v615
    %v1059 = vrot.slane %v1058, 4
    %v1060 = vadd.f32 %v1058, %v1059
    %v1061 = vrot.slane %v1060, 2
    %v1062 = vadd.f32 %v1060, %v1061
    %v1063 = vrot.slane %v1062, 1
    %v1064 = vadd.f32 %v1062, %v1063
    %v1065 = vrcp.pop 16.0
    %v1066 = vmul.f32 16.0, %v1065
    %v1067 = vsub.f32 1.0, %v1066
    %v1068 = vmul.f32 %v1065, %v1067
    %v1069 = vadd.f32 %v1065, %v1068
    %vm1070 = vweird.f32 %v1065
    %v1071 = vsel %vm1070, %v1065, %v1069
    %v1072 = vmul.f32 %v623, %v1071
    %v1073 = vmul.f32 %v630, %v1071
    %v1074 = vmul.f32 %v637, %v1071
    %v1075 = vmul.f32 %v644, %v1071
    %v1076 = vmul.f32 %v651, %v1071
    %v1077 = vmul.f32 %v658, %v1071
    %v1078 = vmul.f32 %v665, %v1071
    %v1079 = vmul.f32 %v672, %v1071
    %v1080 = vmul.f32 %v679, %v1071
    %v1081 = vmul.f32 %v686, %v1071
    %v1082 = vmul.f32 %v693, %v1071
    %v1083 = vmul.f32 %v700, %v1071
    %v1084 = vmul.f32 %v707, %v1071
    %v1085 = vmul.f32 %v714, %v1071
    %v1086 = vmul.f32 %v721, %v1071
    %v1087 = vmul.f32 %v728, %v1071
    %v1088 = vmul.f32 %v735, %v1071
    %v1089 = vmul.f32 %v742, %v1071
    %v1090 = vmul.f32 %v749, %v1071
    %v1091 = vmul.f32 %v756, %v1071
    %v1092 = vmul.f32 %v763, %v1071
    %v1093 = vmul.f32 %v770, %v1071
    %v1094 = vmul.f32 %v777, %v1071
    %v1095 = vmul.f32 %v784, %v1071
    %v1096 = vmul.f32 %v791, %v1071
    %v1097 = vmul.f32 %v798, %v1071
    %v1098 = vmul.f32 %v805, %v1071
    %v1099 = vmul.f32 %v812, %v1071
    %v1100 = vmul.f32 %v819, %v1071
    %v1101 = vmul.f32 %v826, %v1071
    %v1102 = vmul.f32 %v833, %v1071
    %v1103 = vmul.f32 %v840, %v1071
    %v1104 = vmul.f32 %v847, %v1071
    %v1105 = vmul.f32 %v854, %v1071
    %v1106 = vmul.f32 %v861, %v1071
    %v1107 = vmul.f32 %v868, %v1071
    %v1108 = vmul.f32 %v875, %v1071
    %v1109 = vmul.f32 %v882, %v1071
    %v1110 = vmul.f32 %v889, %v1071
    %v1111 = vmul.f32 %v896, %v1071
    %v1112 = vmul.f32 %v903, %v1071
    %v1113 = vmul.f32 %v910, %v1071
    %v1114 = vmul.f32 %v917, %v1071
    %v1115 = vmul.f32 %v924, %v1071
    %v1116 = vmul.f32 %v931, %v1071
    %v1117 = vmul.f32 %v938, %v1071
    %v1118 = vmul.f32 %v945, %v1071
    %v1119 = vmul.f32 %v952, %v1071
    %v1120 = vmul.f32 %v959, %v1071
    %v1121 = vmul.f32 %v966, %v1071
    %v1122 = vmul.f32 %v973, %v1071
    %v1123 = vmul.f32 %v980, %v1071
    %v1124 = vmul.f32 %v987, %v1071
    %v1125 = vmul.f32 %v994, %v1071
    %v1126 = vmul.f32 %v1001, %v1071
    %v1127 = vmul.f32 %v1008, %v1071
    %v1128 = vmul.f32 %v1015, %v1071
    %v1129 = vmul.f32 %v1022, %v1071
    %v1130 = vmul.f32 %v1029, %v1071
    %v1131 = vmul.f32 %v1036, %v1071
    %v1132 = vmul.f32 %v1043, %v1071
    %v1133 = vmul.f32 %v1050, %v1071
    %v1134 = vmul.f32 %v1057, %v1071
    %v1135 = vmul.f32 %v1064, %v1071
    %v1136 = vsub.f32 %v217, %v1072
    %v1137 = vsub.f32 %v426, %v1073
    %v1138 = vsub.f32 %v220, %v1072
    %v1139 = vsub.f32 %v429, %v1073
    %v1140 = vsub.f32 %v223, %v1074
    %v1141 = vsub.f32 %v432, %v1075
    %v1142 = vsub.f32 %v226, %v1074
    %v1143 = vsub.f32 %v435, %v1075
    %v1144 = vsub.f32 %v229, %v1076
    %v1145 = vsub.f32 %v438, %v1077
    %v1146 = vsub.f32 %v232, %v1076
    %v1147 = vsub.f32 %v441, %v1077
    %v1148 = vsub.f32 %v235, %v1078
    %v1149 = vsub.f32 %v444, %v1079
    %v1150 = vsub.f32 %v238, %v1078
    %v1151 = vsub.f32 %v447, %v1079
    %v1152 = vsub.f32 %v241, %v1080
    %v1153 = vsub.f32 %v450, %v1081
    %v1154 = vsub.f32 %v244, %v1080
    %v1155 = vsub.f32 %v453, %v1081
    %v1156 = vsub.f32 %v247, %v1082
    %v1157 = vsub.f32 %v456, %v1083
    %v1158 = vsub.f32 %v250, %v1082
    %v1159 = vsub.f32 %v459, %v1083
    %v1160 = vsub.f32 %v253, %v1084
    %v1161 = vsub.f32 %v462, %v1085
    %v1162 = vsub.f32 %v256, %v1084
    %v1163 = vsub.f32 %v465, %v1085
    %v1164 = vsub.f32 %v259, %v1086
    %v1165 = vsub.f32 %v468, %v1087
    %v1166 = vsub.f32 %v262, %v1086
    %v1167 = vsub.f32 %v471, %v1087
    %v1168 = vsub.f32 %v265, %v1088
    %v1169 = vsub.f32 %v474, %v1089
    %v1170 = vsub.f32 %v268, %v1088
    %v1171 = vsub.f32 %v477, %v1089
    %v1172 = vsub.f32 %v271, %v1090
    %v1173 = vsub.f32 %v480, %v1091
    %v1174 = vsub.f32 %v274, %v1090
    %v1175 = vsub.f32 %v483, %v1091
    %v1176 = vsub.f32 %v277, %v1092
    %v1177 = vsub.f32 %v486, %v1093
    %v1178 = vsub.f32 %v280, %v1092
    %v1179 = vsub.f32 %v489, %v1093
    %v1180 = vsub.f32 %v283, %v1094
    %v1181 = vsub.f32 %v492, %v1095
    %v1182 = vsub.f32 %v286, %v1094
    %v1183 = vsub.f32 %v495, %v1095
    %v1184 = vsub.f32 %v289, %v1096
    %v1185 = vsub.f32 %v498, %v1097
    %v1186 = vsub.f32 %v292, %v1096
    %v1187 = vsub.f32 %v501, %v1097
    %v1188 = vsub.f32 %v295, %v1098
    %v1189 = vsub.f32 %v504, %v1099
    %v1190 = vsub.f32 %v298, %v1098
    %v1191 = vsub.f32 %v507, %v1099
    %v1192 = vsub.f32 %v301, %v1100
    %v1193 = vsub.f32 %v510, %v1101
    %v1194 = vsub.f32 %v304, %v1100
    %v1195 = vsub.f32 %v513, %v1101
    %v1196 = vsub.f32 %v307, %v1102
    %v1197 = vsub.f32 %v516, %v1103
    %v1198 = vsub.f32 %v310, %v1102
    %v1199 = vsub.f32 %v519, %v1103
    %v1200 = vsub.f32 %v313, %v1104
    %v1201 = vsub.f32 %v522, %v1105
    %v1202 = vsub.f32 %v316, %v1104
    %v1203 = vsub.f32 %v525, %v1105
    %v1204 = vsub.f32 %v319, %v1106
    %v1205 = vsub.f32 %v528, %v1107
    %v1206 = vsub.f32 %v322, %v1106
    %v1207 = vsub.f32 %v531, %v1107
    %v1208 = vsub.f32 %v325, %v1108
    %v1209 = vsub.f32 %v534, %v1109
    %v1210 = vsub.f32 %v328, %v1108
    %v1211 = vsub.f32 %v537, %v1109
    %v1212 = vsub.f32 %v331, %v1110
    %v1213 = vsub.f32 %v540, %v1111
    %v1214 = vsub.f32 %v334, %v1110
    %v1215 = vsub.f32 %v543, %v1111
    %v1216 = vsub.f32 %v337, %v1112
    %v1217 = vsub.f32 %v546, %v1113
    %v1218 = vsub.f32 %v340, %v1112
    %v1219 = vsub.f32 %v549, %v1113
    %v1220 = vsub.f32 %v343, %v1114
    %v1221 = vsub.f32 %v552, %v1115
    %v1222 = vsub.f32 %v346, %v1114
    %v1223 = vsub.f32 %v555, %v1115
    %v1224 = vsub.f32 %v349, %v1116
    %v1225 = vsub.f32 %v558, %v1117
    %v1226 = vsub.f32 %v352, %v1116
    %v1227 = vsub.f32 %v561, %v1117
    %v1228 = vsub.f32 %v355, %v1118
    %v1229 = vsub.f32 %v564, %v1119
    %v1230 = vsub.f32 %v358, %v1118
    %v1231 = vsub.f32 %v567, %v1119
    %v1232 = vsub.f32 %v361, %v1120
    %v1233 = vsub.f32 %v570, %v1121
    %v1234 = vsub.f32 %v364, %v1120
    %v1235 = vsub.f32 %v573, %v1121
    %v1236 = vsub.f32 %v367, %v1122
    %v1237 = vsub.f32 %v576, %v1123
    %v1238 = vsub.f32 %v370, %v1122
    %v1239 = vsub.f32 %v579, %v1123
    %v1240 = vsub.f32 %v373, %v1124
    %v1241 = vsub.f32 %v582, %v1125
    %v1242 = vsub.f32 %v376, %v1124
    %v1243 = vsub.f32 %v585, %v1125
    %v1244 = vsub.f32 %v379, %v1126
    %v1245 = vsub.f32 %v588, %v1127
    %v1246 = vsub.f32 %v382, %v1126
    %v1247 = vsub.f32 %v591, %v1127
    %v1248 = vsub.f32 %v385, %v1128
    %v1249 = vsub.f32 %v594, %v1129
    %v1250 = vsub.f32 %v388, %v1128
    %v1251 = vsub.f32 %v597, %v1129
    %v1252 = vsub.f32 %v391, %v1130
    %v1253 = vsub.f32 %v600, %v1131
    %v1254 = vsub.f32 %v394, %v1130
    %v1255 = vsub.f32 %v603, %v1131
    %v1256 = vsub.f32 %v397, %v1132
    %v1257 = vsub.f32 %v606, %v1133
    %v1258 = vsub.f32 %v400, %v1132
    %v1259 = vsub.f32 %v609, %v1133
    %v1260 = vsub.f32 %v403, %v1134
    %v1261 = vsub.f32 %v612, %v1135
    %v1262 = vsub.f32 %v406, %v1134
    %v1263 = vsub.f32 %v615, %v1135
    %v1264 = vmul.f32 %v1136, %v1136
    %v1265 = vmul.f32 %v1137, %v1137
    %v1266 = vmul.f32 %v1138, %v1138
    %v1267 = vmul.f32 %v1139, %v1139
    %v1268 = vmul.f32 %v1140, %v1140
    %v1269 = vmul.f32 %v1141, %v1141
    %v1270 = vmul.f32 %v1142, %v1142
    %v1271 = vmul.f32 %v1143, %v1143
    %v1272 = vmul.f32 %v1144, %v1144
    %v1273 = vmul.f32 %v1145, %v1145
    %v1274 = vmul.f32 %v1146, %v1146
    %v1275 = vmul.f32 %v1147, %v1147
    %v1276 = vmul.f32 %v1148, %v1148
    %v1277 = vmul.f32 %v1149, %v1149
    %v1278 = vmul.f32 %v1150, %v1150
    %v1279 = vmul.f32 %v1151, %v1151
    %v1280 = vmul.f32 %v1152, %v1152
    %v1281 = vmul.f32 %v1153, %v1153
    %v1282 = vmul.f32 %v1154, %v1154
    %v1283 = vmul.f32 %v1155, %v1155
    %v1284 = vmul.f32 %v1156, %v1156
    %v1285 = vmul.f32 %v1157, %v1157
    %v1286 = vmul.f32 %v1158, %v1158
    %v1287 = vmul.f32 %v1159, %v1159
    %v1288 = vmul.f32 %v1160, %v1160
    %v1289 = vmul.f32 %v1161, %v1161
    %v1290 = vmul.f32 %v1162, %v1162
    %v1291 = vmul.f32 %v1163, %v1163
    %v1292 = vmul.f32 %v1164, %v1164
    %v1293 = vmul.f32 %v1165, %v1165
    %v1294 = vmul.f32 %v1166, %v1166
    %v1295 = vmul.f32 %v1167, %v1167
    %v1296 = vmul.f32 %v1168, %v1168
    %v1297 = vmul.f32 %v1169, %v1169
    %v1298 = vmul.f32 %v1170, %v1170
    %v1299 = vmul.f32 %v1171, %v1171
    %v1300 = vmul.f32 %v1172, %v1172
    %v1301 = vmul.f32 %v1173, %v1173
    %v1302 = vmul.f32 %v1174, %v1174
    %v1303 = vmul.f32 %v1175, %v1175
    %v1304 = vmul.f32 %v1176, %v1176
    %v1305 = vmul.f32 %v1177, %v1177
    %v1306 = vmul.f32 %v1178, %v1178
    %v1307 = vmul.f32 %v1179, %v1179
    %v1308 = vmul.f32 %v1180, %v1180
    %v1309 = vmul.f32 %v1181, %v1181
    %v1310 = vmul.f32 %v1182, %v1182
    %v1311 = vmul.f32 %v1183, %v1183
    %v1312 = vmul.f32 %v1184, %v1184
    %v1313 = vmul.f32 %v1185, %v1185
    %v1314 = vmul.f32 %v1186, %v1186
    %v1315 = vmul.f32 %v1187, %v1187
    %v1316 = vmul.f32 %v1188, %v1188
    %v1317 = vmul.f32 %v1189, %v1189
    %v1318 = vmul.f32 %v1190, %v1190
    %v1319 = vmul.f32 %v1191, %v1191
    %v1320 = vmul.f32 %v1192, %v1192
    %v1321 = vmul.f32 %v1193, %v1193
    %v1322 = vmul.f32 %v1194, %v1194
    %v1323 = vmul.f32 %v1195, %v1195
    %v1324 = vmul.f32 %v1196, %v1196
    %v1325 = vmul.f32 %v1197, %v1197
    %v1326 = vmul.f32 %v1198, %v1198
    %v1327 = vmul.f32 %v1199, %v1199
    %v1328 = vmul.f32 %v1200, %v1200
    %v1329 = vmul.f32 %v1201, %v1201
    %v1330 = vmul.f32 %v1202, %v1202
    %v1331 = vmul.f32 %v1203, %v1203
    %v1332 = vmul.f32 %v1204, %v1204
    %v1333 = vmul.f32 %v1205, %v1205
    %v1334 = vmul.f32 %v1206, %v1206
    %v1335 = vmul.f32 %v1207, %v1207
    %v1336 = vmul.f32 %v1208, %v1208
    %v1337 = vmul.f32 %v1209, %v1209
    %v1338 = vmul.f32 %v1210, %v1210
    %v1339 = vmul.f32 %v1211, %v1211
    %v1340 = vmul.f32 %v1212, %v1212
    %v1341 = vmul.f32 %v1213, %v1213
    %v1342 = vmul.f32 %v1214, %v1214
    %v1343 = vmul.f32 %v1215, %v1215
    %v1344 = vmul.f32 %v1216, %v1216
    %v1345 = vmul.f32 %v1217, %v1217
    %v1346 = vmul.f32 %v1218, %v1218
    %v1347 = vmul.f32 %v1219, %v1219
    %v1348 = vmul.f32 %v1220, %v1220
    %v1349 = vmul.f32 %v1221, %v1221
    %v1350 = vmul.f32 %v1222, %v1222
    %v1351 = vmul.f32 %v1223, %v1223
    %v1352 = vmul.f32 %v1224, %v1224
    %v1353 = vmul.f32 %v1225, %v1225
    %v1354 = vmul.f32 %v1226, %v1226
    %v1355 = vmul.f32 %v1227, %v1227
    %v1356 = vmul.f32 %v1228, %v1228
    %v1357 = vmul.f32 %v1229, %v1229
    %v1358 = vmul.f32 %v1230, %v1230
    %v1359 = vmul.f32 %v1231, %v1231
    %v1360 = vmul.f32 %v1232, %v1232
    %v1361 = vmul.f32 %v1233, %v1233
    %v1362 = vmul.f32 %v1234, %v1234
    %v1363 = vmul.f32 %v1235, %v1235
    %v1364 = vmul.f32 %v1236, %v1236
    %v1365 = vmul.f32 %v1237, %v1237
    %v1366 = vmul.f32 %v1238, %v1238
    %v1367 = vmul.f32 %v1239, %v1239
    %v1368 = vmul.f32 %v1240, %v1240
    %v1369 = vmul.f32 %v1241, %v1241
    %v1370 = vmul.f32 %v1242, %v1242
    %v1371 = vmul.f32 %v1243, %v1243
    %v1372 = vmul.f32 %v1244, %v1244
    %v1373 = vmul.f32 %v1245, %v1245
    %v1374 = vmul.f32 %v1246, %v1246
    %v1375 = vmul.f32 %v1247, %v1247
    %v1376 = vmul.f32 %v1248, %v1248
    %v1377 = vmul.f32 %v1249, %v1249
    %v1378 = vmul.f32 %v1250, %v1250
    %v1379 = vmul.f32 %v1251, %v1251
    %v1380 = vmul.f32 %v1252, %v1252
    %v1381 = vmul.f32 %v1253, %v1253
    %v1382 = vmul.f32 %v1254, %v1254
    %v1383 = vmul.f32 %v1255, %v1255
    %v1384 = vmul.f32 %v1256, %v1256
    %v1385 = vmul.f32 %v1257, %v1257
    %v1386 = vmul.f32 %v1258, %v1258
    %v1387 = vmul.f32 %v1259, %v1259
    %v1388 = vmul.f32 %v1260, %v1260
    %v1389 = vmul.f32 %v1261, %v1261
    %v1390 = vmul.f32 %v1262, %v1262
    %v1391 = vmul.f32 %v1263, %v1263
    %v1392 = vadd.f32 %v1264, %v1266
    %v1393 = vrot.slane %v1392, 4
    %v1394 = vadd.f32 %v1392, %v1393
    %v1395 = vrot.slane %v1394, 2
    %v1396 = vadd.f32 %v1394, %v1395
    %v1397 = vrot.slane %v1396, 1
    %v1398 = vadd.f32 %v1396, %v1397
    %v1399 = vadd.f32 %v1265, %v1267
    %v1400 = vrot.slane %v1399, 4
    %v1401 = vadd.f32 %v1399, %v1400
    %v1402 = vrot.slane %v1401, 2
    %v1403 = vadd.f32 %v1401, %v1402
    %v1404 = vrot.slane %v1403, 1
    %v1405 = vadd.f32 %v1403, %v1404
    %v1406 = vadd.f32 %v1268, %v1270
    %v1407 = vrot.slane %v1406, 4
    %v1408 = vadd.f32 %v1406, %v1407
    %v1409 = vrot.slane %v1408, 2
    %v1410 = vadd.f32 %v1408, %v1409
    %v1411 = vrot.slane %v1410, 1
    %v1412 = vadd.f32 %v1410, %v1411
    %v1413 = vadd.f32 %v1269, %v1271
    %v1414 = vrot.slane %v1413, 4
    %v1415 = vadd.f32 %v1413, %v1414
    %v1416 = vrot.slane %v1415, 2
    %v1417 = vadd.f32 %v1415, %v1416
    %v1418 = vrot.slane %v1417, 1
    %v1419 = vadd.f32 %v1417, %v1418
    %v1420 = vadd.f32 %v1272, %v1274
    %v1421 = vrot.slane %v1420, 4
    %v1422 = vadd.f32 %v1420, %v1421
    %v1423 = vrot.slane %v1422, 2
    %v1424 = vadd.f32 %v1422, %v1423
    %v1425 = vrot.slane %v1424, 1
    %v1426 = vadd.f32 %v1424, %v1425
    %v1427 = vadd.f32 %v1273, %v1275
    %v1428 = vrot.slane %v1427, 4
    %v1429 = vadd.f32 %v1427, %v1428
    %v1430 = vrot.slane %v1429, 2
    %v1431 = vadd.f32 %v1429, %v1430
    %v1432 = vrot.slane %v1431, 1
    %v1433 = vadd.f32 %v1431, %v1432
    %v1434 = vadd.f32 %v1276, %v1278
    %v1435 = vrot.slane %v1434, 4
    %v1436 = vadd.f32 %v1434, %v1435
    %v1437 = vrot.slane %v1436, 2
    %v1438 = vadd.f32 %v1436, %v1437
    %v1439 = vrot.slane %v1438, 1
    %v1440 = vadd.f32 %v1438, %v1439
    %v1441 = vadd.f32 %v1277, %v1279
    %v1442 = vrot.slane %v1441, 4
    %v1443 = vadd.f32 %v1441, %v1442
    %v1444 = vrot.slane %v1443, 2
    %v1445 = vadd.f32 %v1443, %v1444
    %v1446 = vrot.slane %v1445, 1
    %v1447 = vadd.f32 %v1445, %v1446
    %v1448 = vadd.f32 %v1280, %v1282
    %v1449 = vrot.slane %v1448, 4
    %v1450 = vadd.f32 %v1448, %v1449
    %v1451 = vrot.slane %v1450, 2
    %v1452 = vadd.f32 %v1450, %v1451
    %v1453 = vrot.slane %v1452, 1
    %v1454 = vadd.f32 %v1452, %v1453
    %v1455 = vadd.f32 %v1281, %v1283
    %v1456 = vrot.slane %v1455, 4
    %v1457 = vadd.f32 %v1455, %v1456
    %v1458 = vrot.slane %v1457, 2
    %v1459 = vadd.f32 %v1457, %v1458
    %v1460 = vrot.slane %v1459, 1
    %v1461 = vadd.f32 %v1459, %v1460
    %v1462 = vadd.f32 %v1284, %v1286
    %v1463 = vrot.slane %v1462, 4
    %v1464 = vadd.f32 %v1462, %v1463
    %v1465 = vrot.slane %v1464, 2
    %v1466 = vadd.f32 %v1464, %v1465
    %v1467 = vrot.slane %v1466, 1
    %v1468 = vadd.f32 %v1466, %v1467
    %v1469 = vadd.f32 %v1285, %v1287
    %v1470 = vrot.slane %v1469, 4
    %v1471 = vadd.f32 %v1469, %v1470
    %v1472 = vrot.slane %v1471, 2
    %v1473 = vadd.f32 %v1471, %v1472
    %v1474 = vrot.slane %v1473, 1
    %v1475 = vadd.f32 %v1473, %v1474
    %v1476 = vadd.f32 %v1288, %v1290
    %v1477 = vrot.slane %v1476, 4
    %v1478 = vadd.f32 %v1476, %v1477
    %v1479 = vrot.slane %v1478, 2
    %v1480 = vadd.f32 %v1478, %v1479
    %v1481 = vrot.slane %v1480, 1
    %v1482 = vadd.f32 %v1480, %v1481
    %v1483 = vadd.f32 %v1289, %v1291
    %v1484 = vrot.slane %v1483, 4
    %v1485 = vadd.f32 %v1483, %v1484
    %v1486 = vrot.slane %v1485, 2
    %v1487 = vadd.f32 %v1485, %v1486
    %v1488 = vrot.slane %v1487, 1
    %v1489 = vadd.f32 %v1487, %v1488
    %v1490 = vadd.f32 %v1292, %v1294
    %v1491 = vrot.slane %v1490, 4
    %v1492 = vadd.f32 %v1490, %v1491
    %v1493 = vrot.slane %v1492, 2
    %v1494 = vadd.f32 %v1492, %v1493
    %v1495 = vrot.slane %v1494, 1
    %v1496 = vadd.f32 %v1494, %v1495
    %v1497 = vadd.f32 %v1293, %v1295
    %v1498 = vrot.slane %v1497, 4
    %v1499 = vadd.f32 %v1497, %v1498
    %v1500 = vrot.slane %v1499, 2
    %v1501 = vadd.f32 %v1499, %v1500
    %v1502 = vrot.slane %v1501, 1
    %v1503 = vadd.f32 %v1501, %v1502
    %v1504 = vadd.f32 %v1296, %v1298
    %v1505 = vrot.slane %v1504, 4
    %v1506 = vadd.f32 %v1504, %v1505
    %v1507 = vrot.slane %v1506, 2
    %v1508 = vadd.f32 %v1506, %v1507
    %v1509 = vrot.slane %v1508, 1
    %v1510 = vadd.f32 %v1508, %v1509
    %v1511 = vadd.f32 %v1297, %v1299
    %v1512 = vrot.slane %v1511, 4
    %v1513 = vadd.f32 %v1511, %v1512
    %v1514 = vrot.slane %v1513, 2
    %v1515 = vadd.f32 %v1513, %v1514
    %v1516 = vrot.slane %v1515, 1
    %v1517 = vadd.f32 %v1515, %v1516
    %v1518 = vadd.f32 %v1300, %v1302
    %v1519 = vrot.slane %v1518, 4
    %v1520 = vadd.f32 %v1518, %v1519
    %v1521 = vrot.slane %v1520, 2
    %v1522 = vadd.f32 %v1520, %v1521
    %v1523 = vrot.slane %v1522, 1
    %v1524 = vadd.f32 %v1522, %v1523
    %v1525 = vadd.f32 %v1301, %v1303
    %v1526 = vrot.slane %v1525, 4
    %v1527 = vadd.f32 %v1525, %v1526
    %v1528 = vrot.slane %v1527, 2
    %v1529 = vadd.f32 %v1527, %v1528
    %v1530 = vrot.slane %v1529, 1
    %v1531 = vadd.f32 %v1529, %v1530
    %v1532 = vadd.f32 %v1304, %v1306
    %v1533 = vrot.slane %v1532, 4
    %v1534 = vadd.f32 %v1532, %v1533
    %v1535 = vrot.slane %v1534, 2
    %v1536 = vadd.f32 %v1534, %v1535
    %v1537 = vrot.slane %v1536, 1
    %v1538 = vadd.f32 %v1536, %v1537
    %v1539 = vadd.f32 %v1305, %v1307
    %v1540 = vrot.slane %v1539, 4
    %v1541 = vadd.f32 %v1539, %v1540
    %v1542 = vrot.slane %v1541, 2
    %v1543 = vadd.f32 %v1541, %v1542
    %v1544 = vrot.slane %v1543, 1
    %v1545 = vadd.f32 %v1543, %v1544
    %v1546 = vadd.f32 %v1308, %v1310
    %v1547 = vrot.slane %v1546, 4
    %v1548 = vadd.f32 %v1546, %v1547
    %v1549 = vrot.slane %v1548, 2
    %v1550 = vadd.f32 %v1548, %v1549
    %v1551 = vrot.slane %v1550, 1
    %v1552 = vadd.f32 %v1550, %v1551
    %v1553 = vadd.f32 %v1309, %v1311
    %v1554 = vrot.slane %v1553, 4
    %v1555 = vadd.f32 %v1553, %v1554
    %v1556 = vrot.slane %v1555, 2
    %v1557 = vadd.f32 %v1555, %v1556
    %v1558 = vrot.slane %v1557, 1
    %v1559 = vadd.f32 %v1557, %v1558
    %v1560 = vadd.f32 %v1312, %v1314
    %v1561 = vrot.slane %v1560, 4
    %v1562 = vadd.f32 %v1560, %v1561
    %v1563 = vrot.slane %v1562, 2
    %v1564 = vadd.f32 %v1562, %v1563
    %v1565 = vrot.slane %v1564, 1
    %v1566 = vadd.f32 %v1564, %v1565
    %v1567 = vadd.f32 %v1313, %v1315
    %v1568 = vrot.slane %v1567, 4
    %v1569 = vadd.f32 %v1567, %v1568
    %v1570 = vrot.slane %v1569, 2
    %v1571 = vadd.f32 %v1569, %v1570
    %v1572 = vrot.slane %v1571, 1
    %v1573 = vadd.f32 %v1571, %v1572
    %v1574 = vadd.f32 %v1316, %v1318
    %v1575 = vrot.slane %v1574, 4
    %v1576 = vadd.f32 %v1574, %v1575
    %v1577 = vrot.slane %v1576, 2
    %v1578 = vadd.f32 %v1576, %v1577
    %v1579 = vrot.slane %v1578, 1
    %v1580 = vadd.f32 %v1578, %v1579
    %v1581 = vadd.f32 %v1317, %v1319
    %v1582 = vrot.slane %v1581, 4
    %v1583 = vadd.f32 %v1581, %v1582
    %v1584 = vrot.slane %v1583, 2
    %v1585 = vadd.f32 %v1583, %v1584
    %v1586 = vrot.slane %v1585, 1
    %v1587 = vadd.f32 %v1585, %v1586
    %v1588 = vadd.f32 %v1320, %v1322
    %v1589 = vrot.slane %v1588, 4
    %v1590 = vadd.f32 %v1588, %v1589
    %v1591 = vrot.slane %v1590, 2
    %v1592 = vadd.f32 %v1590, %v1591
    %v1593 = vrot.slane %v1592, 1
    %v1594 = vadd.f32 %v1592, %v1593
    %v1595 = vadd.f32 %v1321, %v1323
    %v1596 = vrot.slane %v1595, 4
    %v1597 = vadd.f32 %v1595, %v1596
    %v1598 = vrot.slane %v1597, 2
    %v1599 = vadd.f32 %v1597, %v1598
    %v1600 = vrot.slane %v1599, 1
    %v1601 = vadd.f32 %v1599, %v1600
    %v1602 = vadd.f32 %v1324, %v1326
    %v1603 = vrot.slane %v1602, 4
    %v1604 = vadd.f32 %v1602, %v1603
    %v1605 = vrot.slane %v1604, 2
    %v1606 = vadd.f32 %v1604, %v1605
    %v1607 = vrot.slane %v1606, 1
    %v1608 = vadd.f32 %v1606, %v1607
    %v1609 = vadd.f32 %v1325, %v1327
    %v1610 = vrot.slane %v1609, 4
    %v1611 = vadd.f32 %v1609, %v1610
    %v1612 = vrot.slane %v1611, 2
    %v1613 = vadd.f32 %v1611, %v1612
    %v1614 = vrot.slane %v1613, 1
    %v1615 = vadd.f32 %v1613, %v1614
    %v1616 = vadd.f32 %v1328, %v1330
    %v1617 = vrot.slane %v1616, 4
    %v1618 = vadd.f32 %v1616, %v1617
    %v1619 = vrot.slane %v1618, 2
    %v1620 = vadd.f32 %v1618, %v1619
    %v1621 = vrot.slane %v1620, 1
    %v1622 = vadd.f32 %v1620, %v1621
    %v1623 = vadd.f32 %v1329, %v1331
    %v1624 = vrot.slane %v1623, 4
    %v1625 = vadd.f32 %v1623, %v1624
    %v1626 = vrot.slane %v1625, 2
    %v1627 = vadd.f32 %v1625, %v1626
    %v1628 = vrot.slane %v1627, 1
    %v1629 = vadd.f32 %v1627, %v1628
    %v1630 = vadd.f32 %v1332, %v1334
    %v1631 = vrot.slane %v1630, 4
    %v1632 = vadd.f32 %v1630, %v1631
    %v1633 = vrot.slane %v1632, 2
    %v1634 = vadd.f32 %v1632, %v1633
    %v1635 = vrot.slane %v1634, 1
    %v1636 = vadd.f32 %v1634, %v1635
    %v1637 = vadd.f32 %v1333, %v1335
    %v1638 = vrot.slane %v1637, 4
    %v1639 = vadd.f32 %v1637, %v1638
    %v1640 = vrot.slane %v1639, 2
    %v1641 = vadd.f32 %v1639, %v1640
    %v1642 = vrot.slane %v1641, 1
    %v1643 = vadd.f32 %v1641, %v1642
    %v1644 = vadd.f32 %v1336, %v1338
    %v1645 = vrot.slane %v1644, 4
    %v1646 = vadd.f32 %v1644, %v1645
    %v1647 = vrot.slane %v1646, 2
    %v1648 = vadd.f32 %v1646, %v1647
    %v1649 = vrot.slane %v1648, 1
    %v1650 = vadd.f32 %v1648, %v1649
    %v1651 = vadd.f32 %v1337, %v1339
    %v1652 = vrot.slane %v1651, 4
    %v1653 = vadd.f32 %v1651, %v1652
    %v1654 = vrot.slane %v1653, 2
    %v1655 = vadd.f32 %v1653, %v1654
    %v1656 = vrot.slane %v1655, 1
    %v1657 = vadd.f32 %v1655, %v1656
    %v1658 = vadd.f32 %v1340, %v1342
    %v1659 = vrot.slane %v1658, 4
    %v1660 = vadd.f32 %v1658, %v1659
    %v1661 = vrot.slane %v1660, 2
    %v1662 = vadd.f32 %v1660, %v1661
    %v1663 = vrot.slane %v1662, 1
    %v1664 = vadd.f32 %v1662, %v1663
    %v1665 = vadd.f32 %v1341, %v1343
    %v1666 = vrot.slane %v1665, 4
    %v1667 = vadd.f32 %v1665, %v1666
    %v1668 = vrot.slane %v1667, 2
    %v1669 = vadd.f32 %v1667, %v1668
    %v1670 = vrot.slane %v1669, 1
    %v1671 = vadd.f32 %v1669, %v1670
    %v1672 = vadd.f32 %v1344, %v1346
    %v1673 = vrot.slane %v1672, 4
    %v1674 = vadd.f32 %v1672, %v1673
    %v1675 = vrot.slane %v1674, 2
    %v1676 = vadd.f32 %v1674, %v1675
    %v1677 = vrot.slane %v1676, 1
    %v1678 = vadd.f32 %v1676, %v1677
    %v1679 = vadd.f32 %v1345, %v1347
    %v1680 = vrot.slane %v1679, 4
    %v1681 = vadd.f32 %v1679, %v1680
    %v1682 = vrot.slane %v1681, 2
    %v1683 = vadd.f32 %v1681, %v1682
    %v1684 = vrot.slane %v1683, 1
    %v1685 = vadd.f32 %v1683, %v1684
    %v1686 = vadd.f32 %v1348, %v1350
    %v1687 = vrot.slane %v1686, 4
    %v1688 = vadd.f32 %v1686, %v1687
    %v1689 = vrot.slane %v1688, 2
    %v1690 = vadd.f32 %v1688, %v1689
    %v1691 = vrot.slane %v1690, 1
    %v1692 = vadd.f32 %v1690, %v1691
    %v1693 = vadd.f32 %v1349, %v1351
    %v1694 = vrot.slane %v1693, 4
    %v1695 = vadd.f32 %v1693, %v1694
    %v1696 = vrot.slane %v1695, 2
    %v1697 = vadd.f32 %v1695, %v1696
    %v1698 = vrot.slane %v1697, 1
    %v1699 = vadd.f32 %v1697, %v1698
    %v1700 = vadd.f32 %v1352, %v1354
    %v1701 = vrot.slane %v1700, 4
    %v1702 = vadd.f32 %v1700, %v1701
    %v1703 = vrot.slane %v1702, 2
    %v1704 = vadd.f32 %v1702, %v1703
    %v1705 = vrot.slane %v1704, 1
    %v1706 = vadd.f32 %v1704, %v1705
    %v1707 = vadd.f32 %v1353, %v1355
    %v1708 = vrot.slane %v1707, 4
    %v1709 = vadd.f32 %v1707, %v1708
    %v1710 = vrot.slane %v1709, 2
    %v1711 = vadd.f32 %v1709, %v1710
    %v1712 = vrot.slane %v1711, 1
    %v1713 = vadd.f32 %v1711, %v1712
    %v1714 = vadd.f32 %v1356, %v1358
    %v1715 = vrot.slane %v1714, 4
    %v1716 = vadd.f32 %v1714, %v1715
    %v1717 = vrot.slane %v1716, 2
    %v1718 = vadd.f32 %v1716, %v1717
    %v1719 = vrot.slane %v1718, 1
    %v1720 = vadd.f32 %v1718, %v1719
    %v1721 = vadd.f32 %v1357, %v1359
    %v1722 = vrot.slane %v1721, 4
    %v1723 = vadd.f32 %v1721, %v1722
    %v1724 = vrot.slane %v1723, 2
    %v1725 = vadd.f32 %v1723, %v1724
    %v1726 = vrot.slane %v1725, 1
    %v1727 = vadd.f32 %v1725, %v1726
    %v1728 = vadd.f32 %v1360, %v1362
    %v1729 = vrot.slane %v1728, 4
    %v1730 = vadd.f32 %v1728, %v1729
    %v1731 = vrot.slane %v1730, 2
    %v1732 = vadd.f32 %v1730, %v1731
    %v1733 = vrot.slane %v1732, 1
    %v1734 = vadd.f32 %v1732, %v1733
    %v1735 = vadd.f32 %v1361, %v1363
    %v1736 = vrot.slane %v1735, 4
    %v1737 = vadd.f32 %v1735, %v1736
    %v1738 = vrot.slane %v1737, 2
    %v1739 = vadd.f32 %v1737, %v1738
    %v1740 = vrot.slane %v1739, 1
    %v1741 = vadd.f32 %v1739, %v1740
    %v1742 = vadd.f32 %v1364, %v1366
    %v1743 = vrot.slane %v1742, 4
    %v1744 = vadd.f32 %v1742, %v1743
    %v1745 = vrot.slane %v1744, 2
    %v1746 = vadd.f32 %v1744, %v1745
    %v1747 = vrot.slane %v1746, 1
    %v1748 = vadd.f32 %v1746, %v1747
    %v1749 = vadd.f32 %v1365, %v1367
    %v1750 = vrot.slane %v1749, 4
    %v1751 = vadd.f32 %v1749, %v1750
    %v1752 = vrot.slane %v1751, 2
    %v1753 = vadd.f32 %v1751, %v1752
    %v1754 = vrot.slane %v1753, 1
    %v1755 = vadd.f32 %v1753, %v1754
    %v1756 = vadd.f32 %v1368, %v1370
    %v1757 = vrot.slane %v1756, 4
    %v1758 = vadd.f32 %v1756, %v1757
    %v1759 = vrot.slane %v1758, 2
    %v1760 = vadd.f32 %v1758, %v1759
    %v1761 = vrot.slane %v1760, 1
    %v1762 = vadd.f32 %v1760, %v1761
    %v1763 = vadd.f32 %v1369, %v1371
    %v1764 = vrot.slane %v1763, 4
    %v1765 = vadd.f32 %v1763, %v1764
    %v1766 = vrot.slane %v1765, 2
    %v1767 = vadd.f32 %v1765, %v1766
    %v1768 = vrot.slane %v1767, 1
    %v1769 = vadd.f32 %v1767, %v1768
    %v1770 = vadd.f32 %v1372, %v1374
    %v1771 = vrot.slane %v1770, 4
    %v1772 = vadd.f32 %v1770, %v1771
    %v1773 = vrot.slane %v1772, 2
    %v1774 = vadd.f32 %v1772, %v1773
    %v1775 = vrot.slane %v1774, 1
    %v1776 = vadd.f32 %v1774, %v1775
    %v1777 = vadd.f32 %v1373, %v1375
    %v1778 = vrot.slane %v1777, 4
    %v1779 = vadd.f32 %v1777, %v1778
    %v1780 = vrot.slane %v1779, 2
    %v1781 = vadd.f32 %v1779, %v1780
    %v1782 = vrot.slane %v1781, 1
    %v1783 = vadd.f32 %v1781, %v1782
    %v1784 = vadd.f32 %v1376, %v1378
    %v1785 = vrot.slane %v1784, 4
    %v1786 = vadd.f32 %v1784, %v1785
    %v1787 = vrot.slane %v1786, 2
    %v1788 = vadd.f32 %v1786, %v1787
    %v1789 = vrot.slane %v1788, 1
    %v1790 = vadd.f32 %v1788, %v1789
    %v1791 = vadd.f32 %v1377, %v1379
    %v1792 = vrot.slane %v1791, 4
    %v1793 = vadd.f32 %v1791, %v1792
    %v1794 = vrot.slane %v1793, 2
    %v1795 = vadd.f32 %v1793, %v1794
    %v1796 = vrot.slane %v1795, 1
    %v1797 = vadd.f32 %v1795, %v1796
    %v1798 = vadd.f32 %v1380, %v1382
    %v1799 = vrot.slane %v1798, 4
    %v1800 = vadd.f32 %v1798, %v1799
    %v1801 = vrot.slane %v1800, 2
    %v1802 = vadd.f32 %v1800, %v1801
    %v1803 = vrot.slane %v1802, 1
    %v1804 = vadd.f32 %v1802, %v1803
    %v1805 = vadd.f32 %v1381, %v1383
    %v1806 = vrot.slane %v1805, 4
    %v1807 = vadd.f32 %v1805, %v1806
    %v1808 = vrot.slane %v1807, 2
    %v1809 = vadd.f32 %v1807, %v1808
    %v1810 = vrot.slane %v1809, 1
    %v1811 = vadd.f32 %v1809, %v1810
    %v1812 = vadd.f32 %v1384, %v1386
    %v1813 = vrot.slane %v1812, 4
    %v1814 = vadd.f32 %v1812, %v1813
    %v1815 = vrot.slane %v1814, 2
    %v1816 = vadd.f32 %v1814, %v1815
    %v1817 = vrot.slane %v1816, 1
    %v1818 = vadd.f32 %v1816, %v1817
    %v1819 = vadd.f32 %v1385, %v1387
    %v1820 = vrot.slane %v1819, 4
    %v1821 = vadd.f32 %v1819, %v1820
    %v1822 = vrot.slane %v1821, 2
    %v1823 = vadd.f32 %v1821, %v1822
    %v1824 = vrot.slane %v1823, 1
    %v1825 = vadd.f32 %v1823, %v1824
    %v1826 = vadd.f32 %v1388, %v1390
    %v1827 = vrot.slane %v1826, 4
    %v1828 = vadd.f32 %v1826, %v1827
    %v1829 = vrot.slane %v1828, 2
    %v1830 = vadd.f32 %v1828, %v1829
    %v1831 = vrot.slane %v1830, 1
    %v1832 = vadd.f32 %v1830, %v1831
    %v1833 = vadd.f32 %v1389, %v1391
    %v1834 = vrot.slane %v1833, 4
    %v1835 = vadd.f32 %v1833, %v1834
    %v1836 = vrot.slane %v1835, 2
    %v1837 = vadd.f32 %v1835, %v1836
    %v1838 = vrot.slane %v1837, 1
    %v1839 = vadd.f32 %v1837, %v1838
    %v1840 = vmul.f32 %v1398, %v1071
    %v1841 = vmul.f32 %v1405, %v1071
    %v1842 = vmul.f32 %v1412, %v1071
    %v1843 = vmul.f32 %v1419, %v1071
    %v1844 = vmul.f32 %v1426, %v1071
    %v1845 = vmul.f32 %v1433, %v1071
    %v1846 = vmul.f32 %v1440, %v1071
    %v1847 = vmul.f32 %v1447, %v1071
    %v1848 = vmul.f32 %v1454, %v1071
    %v1849 = vmul.f32 %v1461, %v1071
    %v1850 = vmul.f32 %v1468, %v1071
    %v1851 = vmul.f32 %v1475, %v1071
    %v1852 = vmul.f32 %v1482, %v1071
    %v1853 = vmul.f32 %v1489, %v1071
    %v1854 = vmul.f32 %v1496, %v1071
    %v1855 = vmul.f32 %v1503, %v1071
    %v1856 = vmul.f32 %v1510, %v1071
    %v1857 = vmul.f32 %v1517, %v1071
    %v1858 = vmul.f32 %v1524, %v1071
    %v1859 = vmul.f32 %v1531, %v1071
    %v1860 = vmul.f32 %v1538, %v1071
    %v1861 = vmul.f32 %v1545, %v1071
    %v1862 = vmul.f32 %v1552, %v1071
    %v1863 = vmul.f32 %v1559, %v1071
    %v1864 = vmul.f32 %v1566, %v1071
    %v1865 = vmul.f32 %v1573, %v1071
    %v1866 = vmul.f32 %v1580, %v1071
    %v1867 = vmul.f32 %v1587, %v1071
    %v1868 = vmul.f32 %v1594, %v1071
    %v1869 = vmul.f32 %v1601, %v1071
    %v1870 = vmul.f32 %v1608, %v1071
    %v1871 = vmul.f32 %v1615, %v1071
    %v1872 = vmul.f32 %v1622, %v1071
    %v1873 = vmul.f32 %v1629, %v1071
    %v1874 = vmul.f32 %v1636, %v1071
    %v1875 = vmul.f32 %v1643, %v1071
    %v1876 = vmul.f32 %v1650, %v1071
    %v1877 = vmul.f32 %v1657, %v1071
    %v1878 = vmul.f32 %v1664, %v1071
    %v1879 = vmul.f32 %v1671, %v1071
    %v1880 = vmul.f32 %v1678, %v1071
    %v1881 = vmul.f32 %v1685, %v1071
    %v1882 = vmul.f32 %v1692, %v1071
    %v1883 = vmul.f32 %v1699, %v1071
    %v1884 = vmul.f32 %v1706, %v1071
    %v1885 = vmul.f32 %v1713, %v1071
    %v1886 = vmul.f32 %v1720, %v1071
    %v1887 = vmul.f32 %v1727, %v1071
    %v1888 = vmul.f32 %v1734, %v1071
    %v1889 = vmul.f32 %v1741, %v1071
    %v1890 = vmul.f32 %v1748, %v1071
    %v1891 = vmul.f32 %v1755, %v1071
    %v1892 = vmul.f32 %v1762, %v1071
    %v1893 = vmul.f32 %v1769, %v1071
    %v1894 = vmul.f32 %v1776, %v1071
    %v1895 = vmul.f32 %v1783, %v1071
    %v1896 = vmul.f32 %v1790, %v1071
    %v1897 = vmul.f32 %v1797, %v1071
    %v1898 = vmul.f32 %v1804, %v1071
    %v1899 = vmul.f32 %v1811, %v1071
    %v1900 = vmul.f32 %v1818, %v1071
    %v1901 = vmul.f32 %v1825, %v1071
    %v1902 = vmul.f32 %v1832, %v1071
    %v1903 = vmul.f32 %v1839, %v1071
    %v1904 = vadd.f32 %v1840, 1e-06
    %v1905 = vadd.f32 %v1841, 1e-06
    %v1906 = vadd.f32 %v1842, 1e-06
    %v1907 = vadd.f32 %v1843, 1e-06
    %v1908 = vadd.f32 %v1844, 1e-06
    %v1909 = vadd.f32 %v1845, 1e-06
    %v1910 = vadd.f32 %v1846, 1e-06
    %v1911 = vadd.f32 %v1847, 1e-06
    %v1912 = vadd.f32 %v1848, 1e-06
    %v1913 = vadd.f32 %v1849, 1e-06
    %v1914 = vadd.f32 %v1850, 1e-06
    %v1915 = vadd.f32 %v1851, 1e-06
    %v1916 = vadd.f32 %v1852, 1e-06
    %v1917 = vadd.f32 %v1853, 1e-06
    %v1918 = vadd.f32 %v1854, 1e-06
    %v1919 = vadd.f32 %v1855, 1e-06
    %v1920 = vadd.f32 %v1856, 1e-06
    %v1921 = vadd.f32 %v1857, 1e-06
    %v1922 = vadd.f32 %v1858, 1e-06
    %v1923 = vadd.f32 %v1859, 1e-06
    %v1924 = vadd.f32 %v1860, 1e-06
    %v1925 = vadd.f32 %v1861, 1e-06
    %v1926 = vadd.f32 %v1862, 1e-06
    %v1927 = vadd.f32 %v1863, 1e-06
    %v1928 = vadd.f32 %v1864, 1e-06
    %v1929 = vadd.f32 %v1865, 1e-06
    %v1930 = vadd.f32 %v1866, 1e-06
    %v1931 = vadd.f32 %v1867, 1e-06
    %v1932 = vadd.f32 %v1868, 1e-06
    %v1933 = vadd.f32 %v1869, 1e-06
    %v1934 = vadd.f32 %v1870, 1e-06
    %v1935 = vadd.f32 %v1871, 1e-06
    %v1936 = vadd.f32 %v1872, 1e-06
    %v1937 = vadd.f32 %v1873, 1e-06
    %v1938 = vadd.f32 %v1874, 1e-06
    %v1939 = vadd.f32 %v1875, 1e-06
    %v1940 = vadd.f32 %v1876, 1e-06
    %v1941 = vadd.f32 %v1877, 1e-06
    %v1942 = vadd.f32 %v1878, 1e-06
    %v1943 = vadd.f32 %v1879, 1e-06
    %v1944 = vadd.f32 %v1880, 1e-06
    %v1945 = vadd.f32 %v1881, 1e-06
    %v1946 = vadd.f32 %v1882, 1e-06
    %v1947 = vadd.f32 %v1883, 1e-06
    %v1948 = vadd.f32 %v1884, 1e-06
    %v1949 = vadd.f32 %v1885, 1e-06
    %v1950 = vadd.f32 %v1886, 1e-06
    %v1951 = vadd.f32 %v1887, 1e-06
    %v1952 = vadd.f32 %v1888, 1e-06
    %v1953 = vadd.f32 %v1889, 1e-06
    %v1954 = vadd.f32 %v1890, 1e-06
    %v1955 = vadd.f32 %v1891, 1e-06
    %v1956 = vadd.f32 %v1892, 1e-06
    %v1957 = vadd.f32 %v1893, 1e-06
    %v1958 = vadd.f32 %v1894, 1e-06
    %v1959 = vadd.f32 %v1895, 1e-06
    %v1960 = vadd.f32 %v1896, 1e-06
    %v1961 = vadd.f32 %v1897, 1e-06
    %v1962 = vadd.f32 %v1898, 1e-06
    %v1963 = vadd.f32 %v1899, 1e-06
    %v1964 = vadd.f32 %v1900, 1e-06
    %v1965 = vadd.f32 %v1901, 1e-06
    %v1966 = vadd.f32 %v1902, 1e-06
    %v1967 = vadd.f32 %v1903, 1e-06
    %v1968 = vrsqrt.pop %v1904
    %v1969 = vmul.f32 %v1968, %v1904
    %v1970 = vmul.f32 %v1969, %v1968
    %v1971 = vmul.f32 0.5, %v1970
    %v1972 = vsub.f32 1.5, %v1971
    %v1973 = vmul.f32 %v1968, %v1972
    %vm1974 = vweird.f32 %v1904
    %vm1975 = vweird.f32 %v1968
    %vm1976 = vmor %vm1974, %vm1975
    %v1977 = vsel %vm1976, %v1968, %v1973
    %v1978 = vrsqrt.pop %v1905
    %v1979 = vmul.f32 %v1978, %v1905
    %v1980 = vmul.f32 %v1979, %v1978
    %v1981 = vmul.f32 0.5, %v1980
    %v1982 = vsub.f32 1.5, %v1981
    %v1983 = vmul.f32 %v1978, %v1982
    %vm1984 = vweird.f32 %v1905
    %vm1985 = vweird.f32 %v1978
    %vm1986 = vmor %vm1984, %vm1985
    %v1987 = vsel %vm1986, %v1978, %v1983
    %v1988 = vrsqrt.pop %v1906
    %v1989 = vmul.f32 %v1988, %v1906
    %v1990 = vmul.f32 %v1989, %v1988
    %v1991 = vmul.f32 0.5, %v1990
    %v1992 = vsub.f32 1.5, %v1991
    %v1993 = vmul.f32 %v1988, %v1992
    %vm1994 = vweird.f32 %v1906
    %vm1995 = vweird.f32 %v1988
    %vm1996 = vmor %vm1994, %vm1995
    %v1997 = vsel %vm1996, %v1988, %v1993
    %v1998 = vrsqrt.pop %v1907
    %v1999 = vmul.f32 %v1998, %v1907
    %v2000 = vmul.f32 %v1999, %v1998
    %v2001 = vmul.f32 0.5, %v2000
    %v2002 = vsub.f32 1.5, %v2001
    %v2003 = vmul.f32 %v1998, %v2002
    %vm2004 = vweird.f32 %v1907
    %vm2005 = vweird.f32 %v1998
    %vm2006 = vmor %vm2004, %vm2005
    %v2007 = vsel %vm2006, %v1998, %v2003
    %v2008 = vrsqrt.pop %v1908
    %v2009 = vmul.f32 %v2008, %v1908
    %v2010 = vmul.f32 %v2009, %v2008
    %v2011 = vmul.f32 0.5, %v2010
    %v2012 = vsub.f32 1.5, %v2011
    %v2013 = vmul.f32 %v2008, %v2012
    %vm2014 = vweird.f32 %v1908
    %vm2015 = vweird.f32 %v2008
    %vm2016 = vmor %vm2014, %vm2015
    %v2017 = vsel %vm2016, %v2008, %v2013
    %v2018 = vrsqrt.pop %v1909
    %v2019 = vmul.f32 %v2018, %v1909
    %v2020 = vmul.f32 %v2019, %v2018
    %v2021 = vmul.f32 0.5, %v2020
    %v2022 = vsub.f32 1.5, %v2021
    %v2023 = vmul.f32 %v2018, %v2022
    %vm2024 = vweird.f32 %v1909
    %vm2025 = vweird.f32 %v2018
    %vm2026 = vmor %vm2024, %vm2025
    %v2027 = vsel %vm2026, %v2018, %v2023
    %v2028 = vrsqrt.pop %v1910
    %v2029 = vmul.f32 %v2028, %v1910
    %v2030 = vmul.f32 %v2029, %v2028
    %v2031 = vmul.f32 0.5, %v2030
    %v2032 = vsub.f32 1.5, %v2031
    %v2033 = vmul.f32 %v2028, %v2032
    %vm2034 = vweird.f32 %v1910
    %vm2035 = vweird.f32 %v2028
    %vm2036 = vmor %vm2034, %vm2035
    %v2037 = vsel %vm2036, %v2028, %v2033
    %v2038 = vrsqrt.pop %v1911
    %v2039 = vmul.f32 %v2038, %v1911
    %v2040 = vmul.f32 %v2039, %v2038
    %v2041 = vmul.f32 0.5, %v2040
    %v2042 = vsub.f32 1.5, %v2041
    %v2043 = vmul.f32 %v2038, %v2042
    %vm2044 = vweird.f32 %v1911
    %vm2045 = vweird.f32 %v2038
    %vm2046 = vmor %vm2044, %vm2045
    %v2047 = vsel %vm2046, %v2038, %v2043
    %v2048 = vrsqrt.pop %v1912
    %v2049 = vmul.f32 %v2048, %v1912
    %v2050 = vmul.f32 %v2049, %v2048
    %v2051 = vmul.f32 0.5, %v2050
    %v2052 = vsub.f32 1.5, %v2051
    %v2053 = vmul.f32 %v2048, %v2052
    %vm2054 = vweird.f32 %v1912
    %vm2055 = vweird.f32 %v2048
    %vm2056 = vmor %vm2054, %vm2055
    %v2057 = vsel %vm2056, %v2048, %v2053
    %v2058 = vrsqrt.pop %v1913
    %v2059 = vmul.f32 %v2058, %v1913
    %v2060 = vmul.f32 %v2059, %v2058
    %v2061 = vmul.f32 0.5, %v2060
    %v2062 = vsub.f32 1.5, %v2061
    %v2063 = vmul.f32 %v2058, %v2062
    %vm2064 = vweird.f32 %v1913
    %vm2065 = vweird.f32 %v2058
    %vm2066 = vmor %vm2064, %vm2065
    %v2067 = vsel %vm2066, %v2058, %v2063
    %v2068 = vrsqrt.pop %v1914
    %v2069 = vmul.f32 %v2068, %v1914
    %v2070 = vmul.f32 %v2069, %v2068
    %v2071 = vmul.f32 0.5, %v2070
    %v2072 = vsub.f32 1.5, %v2071
    %v2073 = vmul.f32 %v2068, %v2072
    %vm2074 = vweird.f32 %v1914
    %vm2075 = vweird.f32 %v2068
    %vm2076 = vmor %vm2074, %vm2075
    %v2077 = vsel %vm2076, %v2068, %v2073
    %v2078 = vrsqrt.pop %v1915
    %v2079 = vmul.f32 %v2078, %v1915
    %v2080 = vmul.f32 %v2079, %v2078
    %v2081 = vmul.f32 0.5, %v2080
    %v2082 = vsub.f32 1.5, %v2081
    %v2083 = vmul.f32 %v2078, %v2082
    %vm2084 = vweird.f32 %v1915
    %vm2085 = vweird.f32 %v2078
    %vm2086 = vmor %vm2084, %vm2085
    %v2087 = vsel %vm2086, %v2078, %v2083
    %v2088 = vrsqrt.pop %v1916
    %v2089 = vmul.f32 %v2088, %v1916
    %v2090 = vmul.f32 %v2089, %v2088
    %v2091 = vmul.f32 0.5, %v2090
    %v2092 = vsub.f32 1.5, %v2091
    %v2093 = vmul.f32 %v2088, %v2092
    %vm2094 = vweird.f32 %v1916
    %vm2095 = vweird.f32 %v2088
    %vm2096 = vmor %vm2094, %vm2095
    %v2097 = vsel %vm2096, %v2088, %v2093
    %v2098 = vrsqrt.pop %v1917
    %v2099 = vmul.f32 %v2098, %v1917
    %v2100 = vmul.f32 %v2099, %v2098
    %v2101 = vmul.f32 0.5, %v2100
    %v2102 = vsub.f32 1.5, %v2101
    %v2103 = vmul.f32 %v2098, %v2102
    %vm2104 = vweird.f32 %v1917
    %vm2105 = vweird.f32 %v2098
    %vm2106 = vmor %vm2104, %vm2105
    %v2107 = vsel %vm2106, %v2098, %v2103
    %v2108 = vrsqrt.pop %v1918
    %v2109 = vmul.f32 %v2108, %v1918
    %v2110 = vmul.f32 %v2109, %v2108
    %v2111 = vmul.f32 0.5, %v2110
    %v2112 = vsub.f32 1.5, %v2111
    %v2113 = vmul.f32 %v2108, %v2112
    %vm2114 = vweird.f32 %v1918
    %vm2115 = vweird.f32 %v2108
    %vm2116 = vmor %vm2114, %vm2115
    %v2117 = vsel %vm2116, %v2108, %v2113
    %v2118 = vrsqrt.pop %v1919
    %v2119 = vmul.f32 %v2118, %v1919
    %v2120 = vmul.f32 %v2119, %v2118
    %v2121 = vmul.f32 0.5, %v2120
    %v2122 = vsub.f32 1.5, %v2121
    %v2123 = vmul.f32 %v2118, %v2122
    %vm2124 = vweird.f32 %v1919
    %vm2125 = vweird.f32 %v2118
    %vm2126 = vmor %vm2124, %vm2125
    %v2127 = vsel %vm2126, %v2118, %v2123
    %v2128 = vrsqrt.pop %v1920
    %v2129 = vmul.f32 %v2128, %v1920
    %v2130 = vmul.f32 %v2129, %v2128
    %v2131 = vmul.f32 0.5, %v2130
    %v2132 = vsub.f32 1.5, %v2131
    %v2133 = vmul.f32 %v2128, %v2132
    %vm2134 = vweird.f32 %v1920
    %vm2135 = vweird.f32 %v2128
    %vm2136 = vmor %vm2134, %vm2135
    %v2137 = vsel %vm2136, %v2128, %v2133
    %v2138 = vrsqrt.pop %v1921
    %v2139 = vmul.f32 %v2138, %v1921
    %v2140 = vmul.f32 %v2139, %v2138
    %v2141 = vmul.f32 0.5, %v2140
    %v2142 = vsub.f32 1.5, %v2141
    %v2143 = vmul.f32 %v2138, %v2142
    %vm2144 = vweird.f32 %v1921
    %vm2145 = vweird.f32 %v2138
    %vm2146 = vmor %vm2144, %vm2145
    %v2147 = vsel %vm2146, %v2138, %v2143
    %v2148 = vrsqrt.pop %v1922
    %v2149 = vmul.f32 %v2148, %v1922
    %v2150 = vmul.f32 %v2149, %v2148
    %v2151 = vmul.f32 0.5, %v2150
    %v2152 = vsub.f32 1.5, %v2151
    %v2153 = vmul.f32 %v2148, %v2152
    %vm2154 = vweird.f32 %v1922
    %vm2155 = vweird.f32 %v2148
    %vm2156 = vmor %vm2154, %vm2155
    %v2157 = vsel %vm2156, %v2148, %v2153
    %v2158 = vrsqrt.pop %v1923
    %v2159 = vmul.f32 %v2158, %v1923
    %v2160 = vmul.f32 %v2159, %v2158
    %v2161 = vmul.f32 0.5, %v2160
    %v2162 = vsub.f32 1.5, %v2161
    %v2163 = vmul.f32 %v2158, %v2162
    %vm2164 = vweird.f32 %v1923
    %vm2165 = vweird.f32 %v2158
    %vm2166 = vmor %vm2164, %vm2165
    %v2167 = vsel %vm2166, %v2158, %v2163
    %v2168 = vrsqrt.pop %v1924
    %v2169 = vmul.f32 %v2168, %v1924
    %v2170 = vmul.f32 %v2169, %v2168
    %v2171 = vmul.f32 0.5, %v2170
    %v2172 = vsub.f32 1.5, %v2171
    %v2173 = vmul.f32 %v2168, %v2172
    %vm2174 = vweird.f32 %v1924
    %vm2175 = vweird.f32 %v2168
    %vm2176 = vmor %vm2174, %vm2175
    %v2177 = vsel %vm2176, %v2168, %v2173
    %v2178 = vrsqrt.pop %v1925
    %v2179 = vmul.f32 %v2178, %v1925
    %v2180 = vmul.f32 %v2179, %v2178
    %v2181 = vmul.f32 0.5, %v2180
    %v2182 = vsub.f32 1.5, %v2181
    %v2183 = vmul.f32 %v2178, %v2182
    %vm2184 = vweird.f32 %v1925
    %vm2185 = vweird.f32 %v2178
    %vm2186 = vmor %vm2184, %vm2185
    %v2187 = vsel %vm2186, %v2178, %v2183
    %v2188 = vrsqrt.pop %v1926
    %v2189 = vmul.f32 %v2188, %v1926
    %v2190 = vmul.f32 %v2189, %v2188
    %v2191 = vmul.f32 0.5, %v2190
    %v2192 = vsub.f32 1.5, %v2191
    %v2193 = vmul.f32 %v2188, %v2192
    %vm2194 = vweird.f32 %v1926
    %vm2195 = vweird.f32 %v2188
    %vm2196 = vmor %vm2194, %vm2195
    %v2197 = vsel %vm2196, %v2188, %v2193
    %v2198 = vrsqrt.pop %v1927
    %v2199 = vmul.f32 %v2198, %v1927
    %v2200 = vmul.f32 %v2199, %v2198
    %v2201 = vmul.f32 0.5, %v2200
    %v2202 = vsub.f32 1.5, %v2201
    %v2203 = vmul.f32 %v2198, %v2202
    %vm2204 = vweird.f32 %v1927
    %vm2205 = vweird.f32 %v2198
    %vm2206 = vmor %vm2204, %vm2205
    %v2207 = vsel %vm2206, %v2198, %v2203
    %v2208 = vrsqrt.pop %v1928
    %v2209 = vmul.f32 %v2208, %v1928
    %v2210 = vmul.f32 %v2209, %v2208
    %v2211 = vmul.f32 0.5, %v2210
    %v2212 = vsub.f32 1.5, %v2211
    %v2213 = vmul.f32 %v2208, %v2212
    %vm2214 = vweird.f32 %v1928
    %vm2215 = vweird.f32 %v2208
    %vm2216 = vmor %vm2214, %vm2215
    %v2217 = vsel %vm2216, %v2208, %v2213
    %v2218 = vrsqrt.pop %v1929
    %v2219 = vmul.f32 %v2218, %v1929
    %v2220 = vmul.f32 %v2219, %v2218
    %v2221 = vmul.f32 0.5, %v2220
    %v2222 = vsub.f32 1.5, %v2221
    %v2223 = vmul.f32 %v2218, %v2222
    %vm2224 = vweird.f32 %v1929
    %vm2225 = vweird.f32 %v2218
    %vm2226 = vmor %vm2224, %vm2225
    %v2227 = vsel %vm2226, %v2218, %v2223
    %v2228 = vrsqrt.pop %v1930
    %v2229 = vmul.f32 %v2228, %v1930
    %v2230 = vmul.f32 %v2229, %v2228
    %v2231 = vmul.f32 0.5, %v2230
    %v2232 = vsub.f32 1.5, %v2231
    %v2233 = vmul.f32 %v2228, %v2232
    %vm2234 = vweird.f32 %v1930
    %vm2235 = vweird.f32 %v2228
    %vm2236 = vmor %vm2234, %vm2235
    %v2237 = vsel %vm2236, %v2228, %v2233
    %v2238 = vrsqrt.pop %v1931
    %v2239 = vmul.f32 %v2238, %v1931
    %v2240 = vmul.f32 %v2239, %v2238
    %v2241 = vmul.f32 0.5, %v2240
    %v2242 = vsub.f32 1.5, %v2241
    %v2243 = vmul.f32 %v2238, %v2242
    %vm2244 = vweird.f32 %v1931
    %vm2245 = vweird.f32 %v2238
    %vm2246 = vmor %vm2244, %vm2245
    %v2247 = vsel %vm2246, %v2238, %v2243
    %v2248 = vrsqrt.pop %v1932
    %v2249 = vmul.f32 %v2248, %v1932
    %v2250 = vmul.f32 %v2249, %v2248
    %v2251 = vmul.f32 0.5, %v2250
    %v2252 = vsub.f32 1.5, %v2251
    %v2253 = vmul.f32 %v2248, %v2252
    %vm2254 = vweird.f32 %v1932
    %vm2255 = vweird.f32 %v2248
    %vm2256 = vmor %vm2254, %vm2255
    %v2257 = vsel %vm2256, %v2248, %v2253
    %v2258 = vrsqrt.pop %v1933
    %v2259 = vmul.f32 %v2258, %v1933
    %v2260 = vmul.f32 %v2259, %v2258
    %v2261 = vmul.f32 0.5, %v2260
    %v2262 = vsub.f32 1.5, %v2261
    %v2263 = vmul.f32 %v2258, %v2262
    %vm2264 = vweird.f32 %v1933
    %vm2265 = vweird.f32 %v2258
    %vm2266 = vmor %vm2264, %vm2265
    %v2267 = vsel %vm2266, %v2258, %v2263
    %v2268 = vrsqrt.pop %v1934
    %v2269 = vmul.f32 %v2268, %v1934
    %v2270 = vmul.f32 %v2269, %v2268
    %v2271 = vmul.f32 0.5, %v2270
    %v2272 = vsub.f32 1.5, %v2271
    %v2273 = vmul.f32 %v2268, %v2272
    %vm2274 = vweird.f32 %v1934
    %vm2275 = vweird.f32 %v2268
    %vm2276 = vmor %vm2274, %vm2275
    %v2277 = vsel %vm2276, %v2268, %v2273
    %v2278 = vrsqrt.pop %v1935
    %v2279 = vmul.f32 %v2278, %v1935
    %v2280 = vmul.f32 %v2279, %v2278
    %v2281 = vmul.f32 0.5, %v2280
    %v2282 = vsub.f32 1.5, %v2281
    %v2283 = vmul.f32 %v2278, %v2282
    %vm2284 = vweird.f32 %v1935
    %vm2285 = vweird.f32 %v2278
    %vm2286 = vmor %vm2284, %vm2285
    %v2287 = vsel %vm2286, %v2278, %v2283
    %v2288 = vrsqrt.pop %v1936
    %v2289 = vmul.f32 %v2288, %v1936
    %v2290 = vmul.f32 %v2289, %v2288
    %v2291 = vmul.f32 0.5, %v2290
    %v2292 = vsub.f32 1.5, %v2291
    %v2293 = vmul.f32 %v2288, %v2292
    %vm2294 = vweird.f32 %v1936
    %vm2295 = vweird.f32 %v2288
    %vm2296 = vmor %vm2294, %vm2295
    %v2297 = vsel %vm2296, %v2288, %v2293
    %v2298 = vrsqrt.pop %v1937
    %v2299 = vmul.f32 %v2298, %v1937
    %v2300 = vmul.f32 %v2299, %v2298
    %v2301 = vmul.f32 0.5, %v2300
    %v2302 = vsub.f32 1.5, %v2301
    %v2303 = vmul.f32 %v2298, %v2302
    %vm2304 = vweird.f32 %v1937
    %vm2305 = vweird.f32 %v2298
    %vm2306 = vmor %vm2304, %vm2305
    %v2307 = vsel %vm2306, %v2298, %v2303
    %v2308 = vrsqrt.pop %v1938
    %v2309 = vmul.f32 %v2308, %v1938
    %v2310 = vmul.f32 %v2309, %v2308
    %v2311 = vmul.f32 0.5, %v2310
    %v2312 = vsub.f32 1.5, %v2311
    %v2313 = vmul.f32 %v2308, %v2312
    %vm2314 = vweird.f32 %v1938
    %vm2315 = vweird.f32 %v2308
    %vm2316 = vmor %vm2314, %vm2315
    %v2317 = vsel %vm2316, %v2308, %v2313
    %v2318 = vrsqrt.pop %v1939
    %v2319 = vmul.f32 %v2318, %v1939
    %v2320 = vmul.f32 %v2319, %v2318
    %v2321 = vmul.f32 0.5, %v2320
    %v2322 = vsub.f32 1.5, %v2321
    %v2323 = vmul.f32 %v2318, %v2322
    %vm2324 = vweird.f32 %v1939
    %vm2325 = vweird.f32 %v2318
    %vm2326 = vmor %vm2324, %vm2325
    %v2327 = vsel %vm2326, %v2318, %v2323
    %v2328 = vrsqrt.pop %v1940
    %v2329 = vmul.f32 %v2328, %v1940
    %v2330 = vmul.f32 %v2329, %v2328
    %v2331 = vmul.f32 0.5, %v2330
    %v2332 = vsub.f32 1.5, %v2331
    %v2333 = vmul.f32 %v2328, %v2332
    %vm2334 = vweird.f32 %v1940
    %vm2335 = vweird.f32 %v2328
    %vm2336 = vmor %vm2334, %vm2335
    %v2337 = vsel %vm2336, %v2328, %v2333
    %v2338 = vrsqrt.pop %v1941
    %v2339 = vmul.f32 %v2338, %v1941
    %v2340 = vmul.f32 %v2339, %v2338
    %v2341 = vmul.f32 0.5, %v2340
    %v2342 = vsub.f32 1.5, %v2341
    %v2343 = vmul.f32 %v2338, %v2342
    %vm2344 = vweird.f32 %v1941
    %vm2345 = vweird.f32 %v2338
    %vm2346 = vmor %vm2344, %vm2345
    %v2347 = vsel %vm2346, %v2338, %v2343
    %v2348 = vrsqrt.pop %v1942
    %v2349 = vmul.f32 %v2348, %v1942
    %v2350 = vmul.f32 %v2349, %v2348
    %v2351 = vmul.f32 0.5, %v2350
    %v2352 = vsub.f32 1.5, %v2351
    %v2353 = vmul.f32 %v2348, %v2352
    %vm2354 = vweird.f32 %v1942
    %vm2355 = vweird.f32 %v2348
    %vm2356 = vmor %vm2354, %vm2355
    %v2357 = vsel %vm2356, %v2348, %v2353
    %v2358 = vrsqrt.pop %v1943
    %v2359 = vmul.f32 %v2358, %v1943
    %v2360 = vmul.f32 %v2359, %v2358
    %v2361 = vmul.f32 0.5, %v2360
    %v2362 = vsub.f32 1.5, %v2361
    %v2363 = vmul.f32 %v2358, %v2362
    %vm2364 = vweird.f32 %v1943
    %vm2365 = vweird.f32 %v2358
    %vm2366 = vmor %vm2364, %vm2365
    %v2367 = vsel %vm2366, %v2358, %v2363
    %v2368 = vrsqrt.pop %v1944
    %v2369 = vmul.f32 %v2368, %v1944
    %v2370 = vmul.f32 %v2369, %v2368
    %v2371 = vmul.f32 0.5, %v2370
    %v2372 = vsub.f32 1.5, %v2371
    %v2373 = vmul.f32 %v2368, %v2372
    %vm2374 = vweird.f32 %v1944
    %vm2375 = vweird.f32 %v2368
    %vm2376 = vmor %vm2374, %vm2375
    %v2377 = vsel %vm2376, %v2368, %v2373
    %v2378 = vrsqrt.pop %v1945
    %v2379 = vmul.f32 %v2378, %v1945
    %v2380 = vmul.f32 %v2379, %v2378
    %v2381 = vmul.f32 0.5, %v2380
    %v2382 = vsub.f32 1.5, %v2381
    %v2383 = vmul.f32 %v2378, %v2382
    %vm2384 = vweird.f32 %v1945
    %vm2385 = vweird.f32 %v2378
    %vm2386 = vmor %vm2384, %vm2385
    %v2387 = vsel %vm2386, %v2378, %v2383
    %v2388 = vrsqrt.pop %v1946
    %v2389 = vmul.f32 %v2388, %v1946
    %v2390 = vmul.f32 %v2389, %v2388
    %v2391 = vmul.f32 0.5, %v2390
    %v2392 = vsub.f32 1.5, %v2391
    %v2393 = vmul.f32 %v2388, %v2392
    %vm2394 = vweird.f32 %v1946
    %vm2395 = vweird.f32 %v2388
    %vm2396 = vmor %vm2394, %vm2395
    %v2397 = vsel %vm2396, %v2388, %v2393
    %v2398 = vrsqrt.pop %v1947
    %v2399 = vmul.f32 %v2398, %v1947
    %v2400 = vmul.f32 %v2399, %v2398
    %v2401 = vmul.f32 0.5, %v2400
    %v2402 = vsub.f32 1.5, %v2401
    %v2403 = vmul.f32 %v2398, %v2402
    %vm2404 = vweird.f32 %v1947
    %vm2405 = vweird.f32 %v2398
    %vm2406 = vmor %vm2404, %vm2405
    %v2407 = vsel %vm2406, %v2398, %v2403
    %v2408 = vrsqrt.pop %v1948
    %v2409 = vmul.f32 %v2408, %v1948
    %v2410 = vmul.f32 %v2409, %v2408
    %v2411 = vmul.f32 0.5, %v2410
    %v2412 = vsub.f32 1.5, %v2411
    %v2413 = vmul.f32 %v2408, %v2412
    %vm2414 = vweird.f32 %v1948
    %vm2415 = vweird.f32 %v2408
    %vm2416 = vmor %vm2414, %vm2415
    %v2417 = vsel %vm2416, %v2408, %v2413
    %v2418 = vrsqrt.pop %v1949
    %v2419 = vmul.f32 %v2418, %v1949
    %v2420 = vmul.f32 %v2419, %v2418
    %v2421 = vmul.f32 0.5, %v2420
    %v2422 = vsub.f32 1.5, %v2421
    %v2423 = vmul.f32 %v2418, %v2422
    %vm2424 = vweird.f32 %v1949
    %vm2425 = vweird.f32 %v2418
    %vm2426 = vmor %vm2424, %vm2425
    %v2427 = vsel %vm2426, %v2418, %v2423
    %v2428 = vrsqrt.pop %v1950
    %v2429 = vmul.f32 %v2428, %v1950
    %v2430 = vmul.f32 %v2429, %v2428
    %v2431 = vmul.f32 0.5, %v2430
    %v2432 = vsub.f32 1.5, %v2431
    %v2433 = vmul.f32 %v2428, %v2432
    %vm2434 = vweird.f32 %v1950
    %vm2435 = vweird.f32 %v2428
    %vm2436 = vmor %vm2434, %vm2435
    %v2437 = vsel %vm2436, %v2428, %v2433
    %v2438 = vrsqrt.pop %v1951
    %v2439 = vmul.f32 %v2438, %v1951
    %v2440 = vmul.f32 %v2439, %v2438
    %v2441 = vmul.f32 0.5, %v2440
    %v2442 = vsub.f32 1.5, %v2441
    %v2443 = vmul.f32 %v2438, %v2442
    %vm2444 = vweird.f32 %v1951
    %vm2445 = vweird.f32 %v2438
    %vm2446 = vmor %vm2444, %vm2445
    %v2447 = vsel %vm2446, %v2438, %v2443
    %v2448 = vrsqrt.pop %v1952
    %v2449 = vmul.f32 %v2448, %v1952
    %v2450 = vmul.f32 %v2449, %v2448
    %v2451 = vmul.f32 0.5, %v2450
    %v2452 = vsub.f32 1.5, %v2451
    %v2453 = vmul.f32 %v2448, %v2452
    %vm2454 = vweird.f32 %v1952
    %vm2455 = vweird.f32 %v2448
    %vm2456 = vmor %vm2454, %vm2455
    %v2457 = vsel %vm2456, %v2448, %v2453
    %v2458 = vrsqrt.pop %v1953
    %v2459 = vmul.f32 %v2458, %v1953
    %v2460 = vmul.f32 %v2459, %v2458
    %v2461 = vmul.f32 0.5, %v2460
    %v2462 = vsub.f32 1.5, %v2461
    %v2463 = vmul.f32 %v2458, %v2462
    %vm2464 = vweird.f32 %v1953
    %vm2465 = vweird.f32 %v2458
    %vm2466 = vmor %vm2464, %vm2465
    %v2467 = vsel %vm2466, %v2458, %v2463
    %v2468 = vrsqrt.pop %v1954
    %v2469 = vmul.f32 %v2468, %v1954
    %v2470 = vmul.f32 %v2469, %v2468
    %v2471 = vmul.f32 0.5, %v2470
    %v2472 = vsub.f32 1.5, %v2471
    %v2473 = vmul.f32 %v2468, %v2472
    %vm2474 = vweird.f32 %v1954
    %vm2475 = vweird.f32 %v2468
    %vm2476 = vmor %vm2474, %vm2475
    %v2477 = vsel %vm2476, %v2468, %v2473
    %v2478 = vrsqrt.pop %v1955
    %v2479 = vmul.f32 %v2478, %v1955
    %v2480 = vmul.f32 %v2479, %v2478
    %v2481 = vmul.f32 0.5, %v2480
    %v2482 = vsub.f32 1.5, %v2481
    %v2483 = vmul.f32 %v2478, %v2482
    %vm2484 = vweird.f32 %v1955
    %vm2485 = vweird.f32 %v2478
    %vm2486 = vmor %vm2484, %vm2485
    %v2487 = vsel %vm2486, %v2478, %v2483
    %v2488 = vrsqrt.pop %v1956
    %v2489 = vmul.f32 %v2488, %v1956
    %v2490 = vmul.f32 %v2489, %v2488
    %v2491 = vmul.f32 0.5, %v2490
    %v2492 = vsub.f32 1.5, %v2491
    %v2493 = vmul.f32 %v2488, %v2492
    %vm2494 = vweird.f32 %v1956
    %vm2495 = vweird.f32 %v2488
    %vm2496 = vmor %vm2494, %vm2495
    %v2497 = vsel %vm2496, %v2488, %v2493
    %v2498 = vrsqrt.pop %v1957
    %v2499 = vmul.f32 %v2498, %v1957
    %v2500 = vmul.f32 %v2499, %v2498
    %v2501 = vmul.f32 0.5, %v2500
    %v2502 = vsub.f32 1.5, %v2501
    %v2503 = vmul.f32 %v2498, %v2502
    %vm2504 = vweird.f32 %v1957
    %vm2505 = vweird.f32 %v2498
    %vm2506 = vmor %vm2504, %vm2505
    %v2507 = vsel %vm2506, %v2498, %v2503
    %v2508 = vrsqrt.pop %v1958
    %v2509 = vmul.f32 %v2508, %v1958
    %v2510 = vmul.f32 %v2509, %v2508
    %v2511 = vmul.f32 0.5, %v2510
    %v2512 = vsub.f32 1.5, %v2511
    %v2513 = vmul.f32 %v2508, %v2512
    %vm2514 = vweird.f32 %v1958
    %vm2515 = vweird.f32 %v2508
    %vm2516 = vmor %vm2514, %vm2515
    %v2517 = vsel %vm2516, %v2508, %v2513
    %v2518 = vrsqrt.pop %v1959
    %v2519 = vmul.f32 %v2518, %v1959
    %v2520 = vmul.f32 %v2519, %v2518
    %v2521 = vmul.f32 0.5, %v2520
    %v2522 = vsub.f32 1.5, %v2521
    %v2523 = vmul.f32 %v2518, %v2522
    %vm2524 = vweird.f32 %v1959
    %vm2525 = vweird.f32 %v2518
    %vm2526 = vmor %vm2524, %vm2525
    %v2527 = vsel %vm2526, %v2518, %v2523
    %v2528 = vrsqrt.pop %v1960
    %v2529 = vmul.f32 %v2528, %v1960
    %v2530 = vmul.f32 %v2529, %v2528
    %v2531 = vmul.f32 0.5, %v2530
    %v2532 = vsub.f32 1.5, %v2531
    %v2533 = vmul.f32 %v2528, %v2532
    %vm2534 = vweird.f32 %v1960
    %vm2535 = vweird.f32 %v2528
    %vm2536 = vmor %vm2534, %vm2535
    %v2537 = vsel %vm2536, %v2528, %v2533
    %v2538 = vrsqrt.pop %v1961
    %v2539 = vmul.f32 %v2538, %v1961
    %v2540 = vmul.f32 %v2539, %v2538
    %v2541 = vmul.f32 0.5, %v2540
    %v2542 = vsub.f32 1.5, %v2541
    %v2543 = vmul.f32 %v2538, %v2542
    %vm2544 = vweird.f32 %v1961
    %vm2545 = vweird.f32 %v2538
    %vm2546 = vmor %vm2544, %vm2545
    %v2547 = vsel %vm2546, %v2538, %v2543
    %v2548 = vrsqrt.pop %v1962
    %v2549 = vmul.f32 %v2548, %v1962
    %v2550 = vmul.f32 %v2549, %v2548
    %v2551 = vmul.f32 0.5, %v2550
    %v2552 = vsub.f32 1.5, %v2551
    %v2553 = vmul.f32 %v2548, %v2552
    %vm2554 = vweird.f32 %v1962
    %vm2555 = vweird.f32 %v2548
    %vm2556 = vmor %vm2554, %vm2555
    %v2557 = vsel %vm2556, %v2548, %v2553
    %v2558 = vrsqrt.pop %v1963
    %v2559 = vmul.f32 %v2558, %v1963
    %v2560 = vmul.f32 %v2559, %v2558
    %v2561 = vmul.f32 0.5, %v2560
    %v2562 = vsub.f32 1.5, %v2561
    %v2563 = vmul.f32 %v2558, %v2562
    %vm2564 = vweird.f32 %v1963
    %vm2565 = vweird.f32 %v2558
    %vm2566 = vmor %vm2564, %vm2565
    %v2567 = vsel %vm2566, %v2558, %v2563
    %v2568 = vrsqrt.pop %v1964
    %v2569 = vmul.f32 %v2568, %v1964
    %v2570 = vmul.f32 %v2569, %v2568
    %v2571 = vmul.f32 0.5, %v2570
    %v2572 = vsub.f32 1.5, %v2571
    %v2573 = vmul.f32 %v2568, %v2572
    %vm2574 = vweird.f32 %v1964
    %vm2575 = vweird.f32 %v2568
    %vm2576 = vmor %vm2574, %vm2575
    %v2577 = vsel %vm2576, %v2568, %v2573
    %v2578 = vrsqrt.pop %v1965
    %v2579 = vmul.f32 %v2578, %v1965
    %v2580 = vmul.f32 %v2579, %v2578
    %v2581 = vmul.f32 0.5, %v2580
    %v2582 = vsub.f32 1.5, %v2581
    %v2583 = vmul.f32 %v2578, %v2582
    %vm2584 = vweird.f32 %v1965
    %vm2585 = vweird.f32 %v2578
    %vm2586 = vmor %vm2584, %vm2585
    %v2587 = vsel %vm2586, %v2578, %v2583
    %v2588 = vrsqrt.pop %v1966
    %v2589 = vmul.f32 %v2588, %v1966
    %v2590 = vmul.f32 %v2589, %v2588
    %v2591 = vmul.f32 0.5, %v2590
    %v2592 = vsub.f32 1.5, %v2591
    %v2593 = vmul.f32 %v2588, %v2592
    %vm2594 = vweird.f32 %v1966
    %vm2595 = vweird.f32 %v2588
    %vm2596 = vmor %vm2594, %vm2595
    %v2597 = vsel %vm2596, %v2588, %v2593
    %v2598 = vrsqrt.pop %v1967
    %v2599 = vmul.f32 %v2598, %v1967
    %v2600 = vmul.f32 %v2599, %v2598
    %v2601 = vmul.f32 0.5, %v2600
    %v2602 = vsub.f32 1.5, %v2601
    %v2603 = vmul.f32 %v2598, %v2602
    %vm2604 = vweird.f32 %v1967
    %vm2605 = vweird.f32 %v2598
    %vm2606 = vmor %vm2604, %vm2605
    %v2607 = vsel %vm2606, %v2598, %v2603
    %v2608 = vmul.f32 %v1136, %v1977
    %v2609 = vmul.f32 %v1137, %v1987
    %v2610 = vmul.f32 %v1138, %v1977
    %v2611 = vmul.f32 %v1139, %v1987
    %v2612 = vmul.f32 %v1140, %v1997
    %v2613 = vmul.f32 %v1141, %v2007
    %v2614 = vmul.f32 %v1142, %v1997
    %v2615 = vmul.f32 %v1143, %v2007
    %v2616 = vmul.f32 %v1144, %v2017
    %v2617 = vmul.f32 %v1145, %v2027
    %v2618 = vmul.f32 %v1146, %v2017
    %v2619 = vmul.f32 %v1147, %v2027
    %v2620 = vmul.f32 %v1148, %v2037
    %v2621 = vmul.f32 %v1149, %v2047
    %v2622 = vmul.f32 %v1150, %v2037
    %v2623 = vmul.f32 %v1151, %v2047
    %v2624 = vmul.f32 %v1152, %v2057
    %v2625 = vmul.f32 %v1153, %v2067
    %v2626 = vmul.f32 %v1154, %v2057
    %v2627 = vmul.f32 %v1155, %v2067
    %v2628 = vmul.f32 %v1156, %v2077
    %v2629 = vmul.f32 %v1157, %v2087
    %v2630 = vmul.f32 %v1158, %v2077
    %v2631 = vmul.f32 %v1159, %v2087
    %v2632 = vmul.f32 %v1160, %v2097
    %v2633 = vmul.f32 %v1161, %v2107
    %v2634 = vmul.f32 %v1162, %v2097
    %v2635 = vmul.f32 %v1163, %v2107
    %v2636 = vmul.f32 %v1164, %v2117
    %v2637 = vmul.f32 %v1165, %v2127
    %v2638 = vmul.f32 %v1166, %v2117
    %v2639 = vmul.f32 %v1167, %v2127
    %v2640 = vmul.f32 %v1168, %v2137
    %v2641 = vmul.f32 %v1169, %v2147
    %v2642 = vmul.f32 %v1170, %v2137
    %v2643 = vmul.f32 %v1171, %v2147
    %v2644 = vmul.f32 %v1172, %v2157
    %v2645 = vmul.f32 %v1173, %v2167
    %v2646 = vmul.f32 %v1174, %v2157
    %v2647 = vmul.f32 %v1175, %v2167
    %v2648 = vmul.f32 %v1176, %v2177
    %v2649 = vmul.f32 %v1177, %v2187
    %v2650 = vmul.f32 %v1178, %v2177
    %v2651 = vmul.f32 %v1179, %v2187
    %v2652 = vmul.f32 %v1180, %v2197
    %v2653 = vmul.f32 %v1181, %v2207
    %v2654 = vmul.f32 %v1182, %v2197
    %v2655 = vmul.f32 %v1183, %v2207
    %v2656 = vmul.f32 %v1184, %v2217
    %v2657 = vmul.f32 %v1185, %v2227
    %v2658 = vmul.f32 %v1186, %v2217
    %v2659 = vmul.f32 %v1187, %v2227
    %v2660 = vmul.f32 %v1188, %v2237
    %v2661 = vmul.f32 %v1189, %v2247
    %v2662 = vmul.f32 %v1190, %v2237
    %v2663 = vmul.f32 %v1191, %v2247
    %v2664 = vmul.f32 %v1192, %v2257
    %v2665 = vmul.f32 %v1193, %v2267
    %v2666 = vmul.f32 %v1194, %v2257
    %v2667 = vmul.f32 %v1195, %v2267
    %v2668 = vmul.f32 %v1196, %v2277
    %v2669 = vmul.f32 %v1197, %v2287
    %v2670 = vmul.f32 %v1198, %v2277
    %v2671 = vmul.f32 %v1199, %v2287
    %v2672 = vmul.f32 %v1200, %v2297
    %v2673 = vmul.f32 %v1201, %v2307
    %v2674 = vmul.f32 %v1202, %v2297
    %v2675 = vmul.f32 %v1203, %v2307
    %v2676 = vmul.f32 %v1204, %v2317
    %v2677 = vmul.f32 %v1205, %v2327
    %v2678 = vmul.f32 %v1206, %v2317
    %v2679 = vmul.f32 %v1207, %v2327
    %v2680 = vmul.f32 %v1208, %v2337
    %v2681 = vmul.f32 %v1209, %v2347
    %v2682 = vmul.f32 %v1210, %v2337
    %v2683 = vmul.f32 %v1211, %v2347
    %v2684 = vmul.f32 %v1212, %v2357
    %v2685 = vmul.f32 %v1213, %v2367
    %v2686 = vmul.f32 %v1214, %v2357
    %v2687 = vmul.f32 %v1215, %v2367
    %v2688 = vmul.f32 %v1216, %v2377
    %v2689 = vmul.f32 %v1217, %v2387
    %v2690 = vmul.f32 %v1218, %v2377
    %v2691 = vmul.f32 %v1219, %v2387
    %v2692 = vmul.f32 %v1220, %v2397
    %v2693 = vmul.f32 %v1221, %v2407
    %v2694 = vmul.f32 %v1222, %v2397
    %v2695 = vmul.f32 %v1223, %v2407
    %v2696 = vmul.f32 %v1224, %v2417
    %v2697 = vmul.f32 %v1225, %v2427
    %v2698 = vmul.f32 %v1226, %v2417
    %v2699 = vmul.f32 %v1227, %v2427
    %v2700 = vmul.f32 %v1228, %v2437
    %v2701 = vmul.f32 %v1229, %v2447
    %v2702 = vmul.f32 %v1230, %v2437
    %v2703 = vmul.f32 %v1231, %v2447
    %v2704 = vmul.f32 %v1232, %v2457
    %v2705 = vmul.f32 %v1233, %v2467
    %v2706 = vmul.f32 %v1234, %v2457
    %v2707 = vmul.f32 %v1235, %v2467
    %v2708 = vmul.f32 %v1236, %v2477
    %v2709 = vmul.f32 %v1237, %v2487
    %v2710 = vmul.f32 %v1238, %v2477
    %v2711 = vmul.f32 %v1239, %v2487
    %v2712 = vmul.f32 %v1240, %v2497
    %v2713 = vmul.f32 %v1241, %v2507
    %v2714 = vmul.f32 %v1242, %v2497
    %v2715 = vmul.f32 %v1243, %v2507
    %v2716 = vmul.f32 %v1244, %v2517
    %v2717 = vmul.f32 %v1245, %v2527
    %v2718 = vmul.f32 %v1246, %v2517
    %v2719 = vmul.f32 %v1247, %v2527
    %v2720 = vmul.f32 %v1248, %v2537
    %v2721 = vmul.f32 %v1249, %v2547
    %v2722 = vmul.f32 %v1250, %v2537
    %v2723 = vmul.f32 %v1251, %v2547
    %v2724 = vmul.f32 %v1252, %v2557
    %v2725 = vmul.f32 %v1253, %v2567
    %v2726 = vmul.f32 %v1254, %v2557
    %v2727 = vmul.f32 %v1255, %v2567
    %v2728 = vmul.f32 %v1256, %v2577
    %v2729 = vmul.f32 %v1257, %v2587
    %v2730 = vmul.f32 %v1258, %v2577
    %v2731 = vmul.f32 %v1259, %v2587
    %v2732 = vmul.f32 %v1260, %v2597
    %v2733 = vmul.f32 %v1261, %v2607
    %v2734 = vmul.f32 %v1262, %v2597
    %v2735 = vmul.f32 %v1263, %v2607
    %v2736 = vld [vmem:[#allocation8] sm:$0xff]
    %v2737 = vld [vmem:[#allocation8 + $0x8] sm:$0xff]
    %v2738 = vld [vmem:[#allocation8 + $0x10] sm:$0xff]
    %v2739 = vld [vmem:[#allocation8 + $0x18] sm:$0xff]
    %v2740 = vmul.f32 %v2608, %v2736
    %v2741 = vmul.f32 %v2609, %v2737
    %v2742 = vmul.f32 %v2610, %v2738
    %v2743 = vmul.f32 %v2611, %v2739
    %v2744 = vmul.f32 %v2612, %v2736
    %v2745 = vmul.f32 %v2613, %v2737
    %v2746 = vmul.f32 %v2614, %v2738
    %v2747 = vmul.f32 %v2615, %v2739
    %v2748 = vmul.f32 %v2616, %v2736
    %v2749 = vmul.f32 %v2617, %v2737
    %v2750 = vmul.f32 %v2618, %v2738
    %v2751 = vmul.f32 %v2619, %v2739
    %v2752 = vmul.f32 %v2620, %v2736
    %v2753 = vmul.f32 %v2621, %v2737
    %v2754 = vmul.f32 %v2622, %v2738
    %v2755 = vmul.f32 %v2623, %v2739
    %v2756 = vmul.f32 %v2624, %v2736
    %v2757 = vmul.f32 %v2625, %v2737
    %v2758 = vmul.f32 %v2626, %v2738
    %v2759 = vmul.f32 %v2627, %v2739
    %v2760 = vmul.f32 %v2628, %v2736
    %v2761 = vmul.f32 %v2629, %v2737
    %v2762 = vmul.f32 %v2630, %v2738
    %v2763 = vmul.f32 %v2631, %v2739
    %v2764 = vmul.f32 %v2632, %v2736
    %v2765 = vmul.f32 %v2633, %v2737
    %v2766 = vmul.f32 %v2634, %v2738
    %v2767 = vmul.f32 %v2635, %v2739
    %v2768 = vmul.f32 %v2636, %v2736
    %v2769 = vmul.f32 %v2637, %v2737
    %v2770 = vmul.f32 %v2638, %v2738
    %v2771 = vmul.f32 %v2639, %v2739
    %v2772 = vmul.f32 %v2640, %v2736
    %v2773 = vmul.f32 %v2641, %v2737
    %v2774 = vmul.f32 %v2642, %v2738
    %v2775 = vmul.f32 %v2643, %v2739
    %v2776 = vmul.f32 %v2644, %v2736
    %v2777 = vmul.f32 %v2645, %v2737
    %v2778 = vmul.f32 %v2646, %v2738
    %v2779 = vmul.f32 %v2647, %v2739
    %v2780 = vmul.f32 %v2648, %v2736
    %v2781 = vmul.f32 %v2649, %v2737
    %v2782 = vmul.f32 %v2650, %v2738
    %v2783 = vmul.f32 %v2651, %v2739
    %v2784 = vmul.f32 %v2652, %v2736
    %v2785 = vmul.f32 %v2653, %v2737
    %v2786 = vmul.f32 %v2654, %v2738
    %v2787 = vmul.f32 %v2655, %v2739
    %v2788 = vmul.f32 %v2656, %v2736
    %v2789 = vmul.f32 %v2657, %v2737
    %v2790 = vmul.f32 %v2658, %v2738
    %v2791 = vmul.f32 %v2659, %v2739
    %v2792 = vmul.f32 %v2660, %v2736
    %v2793 = vmul.f32 %v2661, %v2737
    %v2794 = vmul.f32 %v2662, %v2738
    %v2795 = vmul.f32 %v2663, %v2739
    %v2796 = vmul.f32 %v2664, %v2736
    %v2797 = vmul.f32 %v2665, %v2737
    %v2798 = vmul.f32 %v2666, %v2738
    %v2799 = vmul.f32 %v2667, %v2739
    %v2800 = vmul.f32 %v2668, %v2736
    %v2801 = vmul.f32 %v2669, %v2737
    %v2802 = vmul.f32 %v2670, %v2738
    %v2803 = vmul.f32 %v2671, %v2739
    %v2804 = vmul.f32 %v2672, %v2736
    %v2805 = vmul.f32 %v2673, %v2737
    %v2806 = vmul.f32 %v2674, %v2738
    %v2807 = vmul.f32 %v2675, %v2739
    %v2808 = vmul.f32 %v2676, %v2736
    %v2809 = vmul.f32 %v2677, %v2737
    %v2810 = vmul.f32 %v2678, %v2738
    %v2811 = vmul.f32 %v2679, %v2739
    %v2812 = vmul.f32 %v2680, %v2736
    %v2813 = vmul.f32 %v2681, %v2737
    %v2814 = vmul.f32 %v2682, %v2738
    %v2815 = vmul.f32 %v2683, %v2739
    %v2816 = vmul.f32 %v2684, %v2736
    %v2817 = vmul.f32 %v2685, %v2737
    %v2818 = vmul.f32 %v2686, %v2738
    %v2819 = vmul.f32 %v2687, %v2739
    %v2820 = vmul.f32 %v2688, %v2736
    %v2821 = vmul.f32 %v2689, %v2737
    %v2822 = vmul.f32 %v2690, %v2738
    %v2823 = vmul.f32 %v2691, %v2739
    %v2824 = vmul.f32 %v2692, %v2736
    %v2825 = vmul.f32 %v2693, %v2737
    %v2826 = vmul.f32 %v2694, %v2738
    %v2827 = vmul.f32 %v2695, %v2739
    %v2828 = vmul.f32 %v2696, %v2736
    %v2829 = vmul.f32 %v2697, %v2737
    %v2830 = vmul.f32 %v2698, %v2738
    %v2831 = vmul.f32 %v2699, %v2739
    %v2832 = vmul.f32 %v2700, %v2736
    %v2833 = vmul.f32 %v2701, %v2737
    %v2834 = vmul.f32 %v2702, %v2738
    %v2835 = vmul.f32 %v2703, %v2739
    %v2836 = vmul.f32 %v2704, %v2736
    %v2837 = vmul.f32 %v2705, %v2737
    %v2838 = vmul.f32 %v2706, %v2738
    %v2839 = vmul.f32 %v2707, %v2739
    %v2840 = vmul.f32 %v2708, %v2736
    %v2841 = vmul.f32 %v2709, %v2737
    %v2842 = vmul.f32 %v2710, %v2738
    %v2843 = vmul.f32 %v2711, %v2739
    %v2844 = vmul.f32 %v2712, %v2736
    %v2845 = vmul.f32 %v2713, %v2737
    %v2846 = vmul.f32 %v2714, %v2738
    %v2847 = vmul.f32 %v2715, %v2739
    %v2848 = vmul.f32 %v2716, %v2736
    %v2849 = vmul.f32 %v2717, %v2737
    %v2850 = vmul.f32 %v2718, %v2738
    %v2851 = vmul.f32 %v2719, %v2739
    %v2852 = vmul.f32 %v2720, %v2736
    %v2853 = vmul.f32 %v2721, %v2737
    %v2854 = vmul.f32 %v2722, %v2738
    %v2855 = vmul.f32 %v2723, %v2739
    %v2856 = vmul.f32 %v2724, %v2736
    %v2857 = vmul.f32 %v2725, %v2737
    %v2858 = vmul.f32 %v2726, %v2738
    %v2859 = vmul.f32 %v2727, %v2739
    %v2860 = vmul.f32 %v2728, %v2736
    %v2861 = vmul.f32 %v2729, %v2737
    %v2862 = vmul.f32 %v2730, %v2738
    %v2863 = vmul.f32 %v2731, %v2739
    %v2864 = vmul.f32 %v2732, %v2736
    %v2865 = vmul.f32 %v2733, %v2737
    %v2866 = vmul.f32 %v2734, %v2738
    %v2867 = vmul.f32 %v2735, %v2739
    %v2868 = vld [vmem:[#allocation10] sm:$0xff]
    %v2869 = vld [vmem:[#allocation10 + $0x8] sm:$0xff]
    %v2870 = vld [vmem:[#allocation10 + $0x10] sm:$0xff]
    %v2871 = vld [vmem:[#allocation10 + $0x18] sm:$0xff]
    %v2872 = vadd.f32 %v2740, %v2868
    %v2873 = vadd.f32 %v2741, %v2869
    %v2874 = vadd.f32 %v2742, %v2870
    %v2875 = vadd.f32 %v2743, %v2871
    %v2876 = vadd.f32 %v2744, %v2868
    %v2877 = vadd.f32 %v2745, %v2869
    %v2878 = vadd.f32 %v2746, %v2870
    %v2879 = vadd.f32 %v2747, %v2871
    %v2880 = vadd.f32 %v2748, %v2868
    %v2881 = vadd.f32 %v2749, %v2869
    %v2882 = vadd.f32 %v2750, %v2870
    %v2883 = vadd.f32 %v2751, %v2871
    %v2884 = vadd.f32 %v2752, %v2868
    %v2885 = vadd.f32 %v2753, %v2869
    %v2886 = vadd.f32 %v2754, %v2870
    %v2887 = vadd.f32 %v2755, %v2871
    %v2888 = vadd.f32 %v2756, %v2868
    %v2889 = vadd.f32 %v2757, %v2869
    %v2890 = vadd.f32 %v2758, %v2870
    %v2891 = vadd.f32 %v2759, %v2871
    %v2892 = vadd.f32 %v2760, %v2868
    %v2893 = vadd.f32 %v2761, %v2869
    %v2894 = vadd.f32 %v2762, %v2870
    %v2895 = vadd.f32 %v2763, %v2871
    %v2896 = vadd.f32 %v2764, %v2868
    %v2897 = vadd.f32 %v2765, %v2869
    %v2898 = vadd.f32 %v2766, %v2870
    %v2899 = vadd.f32 %v2767, %v2871
    %v2900 = vadd.f32 %v2768, %v2868
    %v2901 = vadd.f32 %v2769, %v2869
    %v2902 = vadd.f32 %v2770, %v2870
    %v2903 = vadd.f32 %v2771, %v2871
    %v2904 = vadd.f32 %v2772, %v2868
    %v2905 = vadd.f32 %v2773, %v2869
    %v2906 = vadd.f32 %v2774, %v2870
    %v2907 = vadd.f32 %v2775, %v2871
    %v2908 = vadd.f32 %v2776, %v2868
    %v2909 = vadd.f32 %v2777, %v2869
    %v2910 = vadd.f32 %v2778, %v2870
    %v2911 = vadd.f32 %v2779, %v2871
    %v2912 = vadd.f32 %v2780, %v2868
    %v2913 = vadd.f32 %v2781, %v2869
    %v2914 = vadd.f32 %v2782, %v2870
    %v2915 = vadd.f32 %v2783, %v2871
    %v2916 = vadd.f32 %v2784, %v2868
    %v2917 = vadd.f32 %v2785, %v2869
    %v2918 = vadd.f32 %v2786, %v2870
    %v2919 = vadd.f32 %v2787, %v2871
    %v2920 = vadd.f32 %v2788, %v2868
    %v2921 = vadd.f32 %v2789, %v2869
    %v2922 = vadd.f32 %v2790, %v2870
    %v2923 = vadd.f32 %v2791, %v2871
    %v2924 = vadd.f32 %v2792, %v2868
    %v2925 = vadd.f32 %v2793, %v2869
    %v2926 = vadd.f32 %v2794, %v2870
    %v2927 = vadd.f32 %v2795, %v2871
    %v2928 = vadd.f32 %v2796, %v2868
    %v2929 = vadd.f32 %v2797, %v2869
    %v2930 = vadd.f32 %v2798, %v2870
    %v2931 = vadd.f32 %v2799, %v2871
    %v2932 = vadd.f32 %v2800, %v2868
    %v2933 = vadd.f32 %v2801, %v2869
    %v2934 = vadd.f32 %v2802, %v2870
    %v2935 = vadd.f32 %v2803, %v2871
    %v2936 = vadd.f32 %v2804, %v2868
    %v2937 = vadd.f32 %v2805, %v2869
    %v2938 = vadd.f32 %v2806, %v2870
    %v2939 = vadd.f32 %v2807, %v2871
    %v2940 = vadd.f32 %v2808, %v2868
    %v2941 = vadd.f32 %v2809, %v2869
    %v2942 = vadd.f32 %v2810, %v2870
    %v2943 = vadd.f32 %v2811, %v2871
    %v2944 = vadd.f32 %v2812, %v2868
    %v2945 = vadd.f32 %v2813, %v2869
    %v2946 = vadd.f32 %v2814, %v2870
    %v2947 = vadd.f32 %v2815, %v2871
    %v2948 = vadd.f32 %v2816, %v2868
    %v2949 = vadd.f32 %v2817, %v2869
    %v2950 = vadd.f32 %v2818, %v2870
    %v2951 = vadd.f32 %v2819, %v2871
    %v2952 = vadd.f32 %v2820, %v2868
    %v2953 = vadd.f32 %v2821, %v2869
    %v2954 = vadd.f32 %v2822, %v2870
    %v2955 = vadd.f32 %v2823, %v2871
    %v2956 = vadd.f32 %v2824, %v2868
    %v2957 = vadd.f32 %v2825, %v2869
    %v2958 = vadd.f32 %v2826, %v2870
    %v2959 = vadd.f32 %v2827, %v2871
    %v2960 = vadd.f32 %v2828, %v2868
    %v2961 = vadd.f32 %v2829, %v2869
    %v2962 = vadd.f32 %v2830, %v2870
    %v2963 = vadd.f32 %v2831, %v2871
    %v2964 = vadd.f32 %v2832, %v2868
    %v2965 = vadd.f32 %v2833, %v2869
    %v2966 = vadd.f32 %v2834, %v2870
    %v2967 = vadd.f32 %v2835, %v2871
    %v2968 = vadd.f32 %v2836, %v2868
    %v2969 = vadd.f32 %v2837, %v2869
    %v2970 = vadd.f32 %v2838, %v2870
    %v2971 = vadd.f32 %v2839, %v2871
    %v2972 = vadd.f32 %v2840, %v2868
    %v2973 = vadd.f32 %v2841, %v2869
    %v2974 = vadd.f32 %v2842, %v2870
    %v2975 = vadd.f32 %v2843, %v2871
    %v2976 = vadd.f32 %v2844, %v2868
    %v2977 = vadd.f32 %v2845, %v2869
    %v2978 = vadd.f32 %v2846, %v2870
    %v2979 = vadd.f32 %v2847, %v2871
    %v2980 = vadd.f32 %v2848, %v2868
    %v2981 = vadd.f32 %v2849, %v2869
    %v2982 = vadd.f32 %v2850, %v2870
    %v2983 = vadd.f32 %v2851, %v2871
    %v2984 = vadd.f32 %v2852, %v2868
    %v2985 = vadd.f32 %v2853, %v2869
    %v2986 = vadd.f32 %v2854, %v2870
    %v2987 = vadd.f32 %v2855, %v2871
    %v2988 = vadd.f32 %v2856, %v2868
    %v2989 = vadd.f32 %v2857, %v2869
    %v2990 = vadd.f32 %v2858, %v2870
    %v2991 = vadd.f32 %v2859, %v2871
    %v2992 = vadd.f32 %v2860, %v2868
    %v2993 = vadd.f32 %v2861, %v2869
    %v2994 = vadd.f32 %v2862, %v2870
    %v2995 = vadd.f32 %v2863, %v2871
    %v2996 = vadd.f32 %v2864, %v2868
    %v2997 = vadd.f32 %v2865, %v2869
    %v2998 = vadd.f32 %v2866, %v2870
    %v2999 = vadd.f32 %v2867, %v2871
    %3000 = vst [vmem:[#allocation11] sm:$0xff] %v2872
    %3001 = vst [vmem:[#allocation11 + $0x8] sm:$0xff] %v2873
    %3002 = vst [vmem:[#allocation11 + $0x10] sm:$0xff] %v2874
    %3003 = vst [vmem:[#allocation11 + $0x18] sm:$0xff] %v2875
    %3004 = vst [vmem:[#allocation11 + $0x20] sm:$0xff] %v2876
    %3005 = vst [vmem:[#allocation11 + $0x28] sm:$0xff] %v2877
    %3006 = vst [vmem:[#allocation11 + $0x30] sm:$0xff] %v2878
    %3007 = vst [vmem:[#allocation11 + $0x38] sm:$0xff] %v2879
    %3008 = vst [vmem:[#allocation11 + $0x40] sm:$0xff] %v2880
    %3009 = vst [vmem:[#allocation11 + $0x48] sm:$0xff] %v2881
    %3010 = vst [vmem:[#allocation11 + $0x50] sm:$0xff] %v2882
    %3011 = vst [vmem:[#allocation11 + $0x58] sm:$0xff] %v2883
    %3012 = vst [vmem:[#allocation11 + $0x60] sm:$0xff] %v2884
    %3013 = vst [vmem:[#allocation11 + $0x68] sm:$0xff] %v2885
    %3014 = vst [vmem:[#allocation11 + $0x70] sm:$0xff] %v2886
    %3015 = vst [vmem:[#allocation11 + $0x78] sm:$0xff] %v2887
    %3016 = vst [vmem:[#allocation11 + $0x80] sm:$0xff] %v2888
    %3017 = vst [vmem:[#allocation11 + $0x88] sm:$0xff] %v2889
    %3018 = vst [vmem:[#allocation11 + $0x90] sm:$0xff] %v2890
    %3019 = vst [vmem:[#allocation11 + $0x98] sm:$0xff] %v2891
    %3020 = vst [vmem:[#allocation11 + $0xa0] sm:$0xff] %v2892
    %3021 = vst [vmem:[#allocation11 + $0xa8] sm:$0xff] %v2893
    %3022 = vst [vmem:[#allocation11 + $0xb0] sm:$0xff] %v2894
    %3023 = vst [vmem:[#allocation11 + $0xb8] sm:$0xff] %v2895
    %3024 = vst [vmem:[#allocation11 + $0xc0] sm:$0xff] %v2896
    %3025 = vst [vmem:[#allocation11 + $0xc8] sm:$0xff] %v2897
    %3026 = vst [vmem:[#allocation11 + $0xd0] sm:$0xff] %v2898
    %3027 = vst [vmem:[#allocation11 + $0xd8] sm:$0xff] %v2899
    %3028 = vst [vmem:[#allocation11 + $0xe0] sm:$0xff] %v2900
    %3029 = vst [vmem:[#allocation11 + $0xe8] sm:$0xff] %v2901
    %3030 = vst [vmem:[#allocation11 + $0xf0] sm:$0xff] %v2902
    %3031 = vst [vmem:[#allocation11 + $0xf8] sm:$0xff] %v2903
    %3032 = vst [vmem:[#allocation11 + $0x100] sm:$0xff] %v2904
    %3033 = vst [vmem:[#allocation11 + $0x108] sm:$0xff] %v2905
    %3034 = vst [vmem:[#allocation11 + $0x110] sm:$0xff] %v2906
    %3035 = vst [vmem:[#allocation11 + $0x118] sm:$0xff] %v2907
    %3036 = vst [vmem:[#allocation11 + $0x120] sm:$0xff] %v2908
    %3037 = vst [vmem:[#allocation11 + $0x128] sm:$0xff] %v2909
    %3038 = vst [vmem:[#allocation11 + $0x130] sm:$0xff] %v2910
    %3039 = vst [vmem:[#allocation11 + $0x138] sm:$0xff] %v2911
    %3040 = vst [vmem:[#allocation11 + $0x140] sm:$0xff] %v2912
    %3041 = vst [vmem:[#allocation11 + $0x148] sm:$0xff] %v2913
    %3042 = vst [vmem:[#allocation11 + $0x150] sm:$0xff] %v2914
    %3043 = vst [vmem:[#allocation11 + $0x158] sm:$0xff] %v2915
    %3044 = vst [vmem:[#allocation11 + $0x160] sm:$0xff] %v2916
    %3045 = vst [vmem:[#allocation11 + $0x168] sm:$0xff] %v2917
    %3046 = vst [vmem:[#allocation11 + $0x170] sm:$0xff] %v2918
    %3047 = vst [vmem:[#allocation11 + $0x178] sm:$0xff] %v2919
    %3048 = vst [vmem:[#allocation11 + $0x180] sm:$0xff] %v2920
    %3049 = vst [vmem:[#allocation11 + $0x188] sm:$0xff] %v2921
    %3050 = vst [vmem:[#allocation11 + $0x190] sm:$0xff] %v2922
    %3051 = vst [vmem:[#allocation11 + $0x198] sm:$0xff] %v2923
    %3052 = vst [vmem:[#allocation11 + $0x1a0] sm:$0xff] %v2924
    %3053 = vst [vmem:[#allocation11 + $0x1a8] sm:$0xff] %v2925
    %3054 = vst [vmem:[#allocation11 + $0x1b0] sm:$0xff] %v2926
    %3055 = vst [vmem:[#allocation11 + $0x1b8] sm:$0xff] %v2927
    %3056 = vst [vmem:[#allocation11 + $0x1c0] sm:$0xff] %v2928
    %3057 = vst [vmem:[#allocation11 + $0x1c8] sm:$0xff] %v2929
    %3058 = vst [vmem:[#allocation11 + $0x1d0] sm:$0xff] %v2930
    %3059 = vst [vmem:[#allocation11 + $0x1d8] sm:$0xff] %v2931
    %3060 = vst [vmem:[#allocation11 + $0x1e0] sm:$0xff] %v2932
    %3061 = vst [vmem:[#allocation11 + $0x1e8] sm:$0xff] %v2933
    %3062 = vst [vmem:[#allocation11 + $0x1f0] sm:$0xff] %v2934
    %3063 = vst [vmem:[#allocation11 + $0x1f8] sm:$0xff] %v2935
    %3064 = vst [vmem:[#allocation11 + $0x200] sm:$0xff] %v2936
    %3065 = vst [vmem:[#allocation11 + $0x208] sm:$0xff] %v2937
    %3066 = vst [vmem:[#allocation11 + $0x210] sm:$0xff] %v2938
    %3067 = vst [vmem:[#allocation11 + $0x218] sm:$0xff] %v2939
    %3068 = vst [vmem:[#allocation11 + $0x220] sm:$0xff] %v2940
    %3069 = vst [vmem:[#allocation11 + $0x228] sm:$0xff] %v2941
    %3070 = vst [vmem:[#allocation11 + $0x230] sm:$0xff] %v2942
    %3071 = vst [vmem:[#allocation11 + $0x238] sm:$0xff] %v2943
    %3072 = vst [vmem:[#allocation11 + $0x240] sm:$0xff] %v2944
    %3073 = vst [vmem:[#allocation11 + $0x248] sm:$0xff] %v2945
    %3074 = vst [vmem:[#allocation11 + $0x250] sm:$0xff] %v2946
    %3075 = vst [vmem:[#allocation11 + $0x258] sm:$0xff] %v2947
    %3076 = vst [vmem:[#allocation11 + $0x260] sm:$0xff] %v2948
    %3077 = vst [vmem:[#allocation11 + $0x268] sm:$0xff] %v2949
    %3078 = vst [vmem:[#allocation11 + $0x270] sm:$0xff] %v2950
    %3079 = vst [vmem:[#allocation11 + $0x278] sm:$0xff] %v2951
    %3080 = vst [vmem:[#allocation11 + $0x280] sm:$0xff] %v2952
    %3081 = vst [vmem:[#allocation11 + $0x288] sm:$0xff] %v2953
    %3082 = vst [vmem:[#allocation11 + $0x290] sm:$0xff] %v2954
    %3083 = vst [vmem:[#allocation11 + $0x298] sm:$0xff] %v2955
    %3084 = vst [vmem:[#allocation11 + $0x2a0] sm:$0xff] %v2956
    %3085 = vst [vmem:[#allocation11 + $0x2a8] sm:$0xff] %v2957
    %3086 = vst [vmem:[#allocation11 + $0x2b0] sm:$0xff] %v2958
    %3087 = vst [vmem:[#allocation11 + $0x2b8] sm:$0xff] %v2959
    %3088 = vst [vmem:[#allocation11 + $0x2c0] sm:$0xff] %v2960
    %3089 = vst [vmem:[#allocation11 + $0x2c8] sm:$0xff] %v2961
    %3090 = vst [vmem:[#allocation11 + $0x2d0] sm:$0xff] %v2962
    %3091 = vst [vmem:[#allocation11 + $0x2d8] sm:$0xff] %v2963
    %3092 = vst [vmem:[#allocation11 + $0x2e0] sm:$0xff] %v2964
    %3093 = vst [vmem:[#allocation11 + $0x2e8] sm:$0xff] %v2965
    %3094 = vst [vmem:[#allocation11 + $0x2f0] sm:$0xff] %v2966
    %3095 = vst [vmem:[#allocation11 + $0x2f8] sm:$0xff] %v2967
    %3096 = vst [vmem:[#allocation11 + $0x300] sm:$0xff] %v2968
    %3097 = vst [vmem:[#allocation11 + $0x308] sm:$0xff] %v2969
    %3098 = vst [vmem:[#allocation11 + $0x310] sm:$0xff] %v2970
    %3099 = vst [vmem:[#allocation11 + $0x318] sm:$0xff] %v2971
    %3100 = vst [vmem:[#allocation11 + $0x320] sm:$0xff] %v2972
    %3101 = vst [vmem:[#allocation11 + $0x328] sm:$0xff] %v2973
    %3102 = vst [vmem:[#allocation11 + $0x330] sm:$0xff] %v2974
    %3103 = vst [vmem:[#allocation11 + $0x338] sm:$0xff] %v2975
    %3104 = vst [vmem:[#allocation11 + $0x340] sm:$0xff] %v2976
    %3105 = vst [vmem:[#allocation11 + $0x348] sm:$0xff] %v2977
    %3106 = vst [vmem:[#allocation11 + $0x350] sm:$0xff] %v2978
    %3107 = vst [vmem:[#allocation11 + $0x358] sm:$0xff] %v2979
    %3108 = vst [vmem:[#allocation11 + $0x360] sm:$0xff] %v2980
    %3109 = vst [vmem:[#allocation11 + $0x368] sm:$0xff] %v2981
    %3110 = vst [vmem:[#allocation11 + $0x370] sm:$0xff] %v2982
    %3111 = vst [vmem:[#allocation11 + $0x378] sm:$0xff] %v2983
    %3112 = vst [vmem:[#allocation11 + $0x380] sm:$0xff] %v2984
    %3113 = vst [vmem:[#allocation11 + $0x388] sm:$0xff] %v2985
    %3114 = vst [vmem:[#allocation11 + $0x390] sm:$0xff] %v2986
    %3115 = vst [vmem:[#allocation11 + $0x398] sm:$0xff] %v2987
    %3116 = vst [vmem:[#allocation11 + $0x3a0] sm:$0xff] %v2988
    %3117 = vst [vmem:[#allocation11 + $0x3a8] sm:$0xff] %v2989
    %3118 = vst [vmem:[#allocation11 + $0x3b0] sm:$0xff] %v2990
    %3119 = vst [vmem:[#allocation11 + $0x3b8] sm:$0xff] %v2991
    %3120 = vst [vmem:[#allocation11 + $0x3c0] sm:$0xff] %v2992
    %3121 = vst [vmem:[#allocation11 + $0x3c8] sm:$0xff] %v2993
    %3122 = vst [vmem:[#allocation11 + $0x3d0] sm:$0xff] %v2994
    %3123 = vst [vmem:[#allocation11 + $0x3d8] sm:$0xff] %v2995
    %3124 = vst [vmem:[#allocation11 + $0x3e0] sm:$0xff] %v2996
    %3125 = vst [vmem:[#allocation11 + $0x3e8] sm:$0xff] %v2997
    %3126 = vst [vmem:[#allocation11 + $0x3f0] sm:$0xff] %v2998
    %3127 = vst [vmem:[#allocation11 + $0x3f8] sm:$0xff] %v2999
    // Predicated region
    $region42: #{tpu_custom_call.1} parent=1 // pred_check
      _
    $region43: #{tpu_custom_call.1} parent=1 // pred_check_branch
      %3129 = sbr.rel (0) target = $region45
    $region44: #{tpu_custom_call.1} parent=1 // pred_region
      %3131 = vsyncadd [#allocation4], 0
      %s3132 = sshll.u32 [#allocation11], 4
      %s3133 = int_to_ptr.vmem [resolvable:$true] %s3132
      %s3134 = sshll.u32 %s5, 4
      %s3135 = int_to_ptr.hbm [resolvable:$true] %s3134
      %3140 = dma.vmem_to_hbm [thread:$0]  %s3133, 16384, %s3135, [#allocation4], 256, 256, 16
    $region45: #{tpu_custom_call.1} parent=1 // pred_fallthru
      _
    // Predicated region
    $region46: #{tpu_custom_call.1} parent=1 // pred_check
      _
    $region47: #{tpu_custom_call.1} parent=1 // pred_check_branch
      %3142 = sbr.rel (0) target = $region49
    $region48: #{tpu_custom_call.1} parent=1 // pred_region
      %3144 = dma.done [#allocation4], 16384
    $region49: #{tpu_custom_call.1} parent=1 // pred_fallthru
      _
    %3145 = vsyncpa [#allocation3], 1
    %3146 = vsyncpa [#allocation6], 1
    %3147 = vsyncpa [#allocation9], 1
    %3148 = vsyncpa [#allocation4], 1

</llo_original>
